<compile_context>
chip_gen: v5e
topology: v5e:2x2
jax: 0.10.0
libtpu: 0.0.40
codegen_flags: <defaults>
</compile_context>

<pallas_src>
import jax
import jax.numpy as jnp
from jax.experimental import pallas as pl
from jax.experimental.pallas import tpu as pltpu


def _whiten_kernel(x_ref, mean_ref, w_ref, o_ref, acc_ref):
    # grid = (B_pad//bt, F//tn, F//tk):
    #   axis 0 -> batch tile b          ("parallel")
    #   axis 1 -> output-feature tile j ("parallel")
    #   axis 2 -> reduction tile k      ("arbitrary", last / innermost)
    k = pl.program_id(2)
    nk = pl.num_programs(2)

    tk = w_ref.shape[0]                       # W block is (tk, tn), pre-transposed
    off = pl.multiple_of(k * tk, 128)         # aligned slice into the resident X stripe

    # X stripe (bt, F) and mean (1, F) are VMEM-resident for the whole (b) tile.
    xm = x_ref[:, pl.ds(off, tk)] - mean_ref[:, pl.ds(off, tk)]   # f32 subtract

    # (bt, tk) @ (tk, tn) on the MXU == (X - mean) @ W.T tile, f32 accumulation.
    part = jnp.dot(
        xm.astype(w_ref.dtype),
        w_ref[...],
        preferred_element_type=jnp.float32,
    )

    # First reduction step stores directly (no separate zero-init pass).
    @pl.when(k == 0)
    def _():
        acc_ref[...] = part

    @pl.when(k != 0)
    def _():
        acc_ref[...] += part

    # Emit output in its target dtype once per (b, j) tile.
    @pl.when(k == nk - 1)
    def _():
        o_ref[...] = acc_ref[...].astype(o_ref.dtype)


def _pick_tile(dim, desired, unit):
    """Largest multiple of `unit` that divides `dim` and is <= desired."""
    t = max(unit, (min(desired, dim) // unit) * unit)
    while dim % t:
        t -= unit
    return t


_VMEM_BUDGET = 48 * 1024 * 1024   # keep under v7x's 64 MiB physical with headroom


def _vmem_need(bt, tn, tk, F, w_bytes, out_bytes):
    return (2 * bt * F * 4            # resident X stripe (double-buffered, f32)
            + 2 * tn * tk * w_bytes   # W tile (double-buffered)
            + 2 * bt * tn * out_bytes # output tile (double-buffered)
            + bt * tn * 4             # f32 accumulator scratch
            + 2 * F * 4)              # resident mean


def whiten_forward(x_nchw, mean, w, *, tn=1024, tk=1024,
                   w_dtype=jnp.bfloat16, out_dtype=None):
    """Y = (flatten(x) - mean) @ w.T   via a tiled Pallas matmul kernel."""
    B = x_nchw.shape[0]
    x = x_nchw.reshape(B, -1)       # row-major, same order as torch.flatten(1)
    F = x.shape[1]
    assert mean.shape == (F,) and w.shape == (F, F)
    # TODO(synk): ragged F (not a multiple of 128) would need padding/masking.
    assert F % 128 == 0, "n_features must be a multiple of 128"

    out_dtype = x_nchw.dtype if out_dtype is None else out_dtype
    w_itemsize = jnp.dtype(w_dtype if w_dtype is not None else w.dtype).itemsize
    out_itemsize = jnp.dtype(out_dtype).itemsize

    tn = _pick_tile(F, tn, 128)
    tk = _pick_tile(F, tk, 128)

    # Pad batch to a full-sublane multiple (>= 8) so vector loads/stores are
    # unmasked; cover the whole padded batch with one tile when VMEM allows so
    # W is streamed from HBM exactly once.
    B_pad = max(8, -(-B // 8) * 8)
    bt = B_pad
    while bt > 8 and _vmem_need(bt, tn, tk, F, w_itemsize, out_itemsize) > _VMEM_BUDGET:
        bt = _pick_tile(B_pad, bt // 2, 8)
    while tn > 128 and _vmem_need(bt, tn, tk, F, w_itemsize, out_itemsize) > _VMEM_BUDGET:
        tn = _pick_tile(F, tn // 2, 128)
    while tk > 128 and _vmem_need(bt, tn, tk, F, w_itemsize, out_itemsize) > _VMEM_BUDGET:
        tk = _pick_tile(F, tk // 2, 128)
    # TODO(synk): if even (bt=8, tn=tk=128) overflows the budget (huge F), fall
    #             back to a k-tiled X BlockSpec instead of the resident stripe.

    # v7x megacore: keep at least 2 steps on some parallel grid axis so the
    # second TensorCore gets work (halving tn is free -- X is resident).
    if (B_pad // bt) * (F // tn) < 2 and F // 128 >= 2:
        tn = _pick_tile(F, max(128, tn // 2), 128)

    if B_pad != B:
        x = jnp.pad(x, ((0, B_pad - B), (0, 0)))

    # Pre-transpose W once in the wrapper so the kernel contracts the RHS
    # sublane dim (MXU-natural). Fuses with the bf16 cast into a single pass.
    wt = w.T.astype(w_dtype if w_dtype is not None else w.dtype)

    # mean kept as one fully VMEM-resident (1, F) block.
    mean2d = mean.astype(x.dtype).reshape(1, F)

    grid = (B_pad // bt, F // tn, F // tk)

    need = _vmem_need(bt, tn, tk, F, w_itemsize, out_itemsize)
    vmem_limit = int(min(max(need + (4 << 20), 16 << 20), 60 << 20))

    x_itemsize = jnp.dtype(x.dtype).itemsize
    cost = pl.CostEstimate(
        flops=2 * B_pad * F * F,
        transcendentals=0,
        bytes_accessed=(
            (B_pad // bt) * F * F * w_itemsize   # W re-streamed once per batch tile
            + B_pad * F * x_itemsize             # X fetched once per batch tile
            + B_pad * F * out_itemsize           # Y written once
            + F * x_itemsize                     # mean
        ),
    )

    out = pl.pallas_call(
        _whiten_kernel,
        out_shape=jax.ShapeDtypeStruct((B_pad, F), out_dtype),
        grid_spec=pltpu.PrefetchScalarGridSpec(
            num_scalar_prefetch=0,
            grid=grid,
            in_specs=[
                # X stripe: resident across j and k (fetched once per batch tile).
                pl.BlockSpec((bt, F), lambda b, j, k: (b, 0)),
                # mean: one resident block for the whole grid.
                pl.BlockSpec((1, F), lambda b, j, k: (0, 0)),
                # W.T tile: tk input features x tn output features.
                pl.BlockSpec((tk, tn), lambda b, j, k: (k, j)),
            ],
            out_specs=pl.BlockSpec((bt, tn), lambda b, j, k: (b, j)),
            scratch_shapes=[pltpu.VMEM((bt, tn), jnp.float32)],
        ),
        compiler_params=pltpu.CompilerParams(
            dimension_semantics=("parallel", "parallel", "arbitrary"),
            vmem_limit_bytes=vmem_limit,
        ),
        cost_estimate=cost,
    )(x, mean2d, wt)

    return out[:B] if B_pad != B else out


if __name__ == "__main__":
    key = jax.random.PRNGKey(0)
    k_x, k_m, k_w = jax.random.split(key, 3)

    # Small shapes consistent with the module: (C,H,W)=(4,16,16) => F=1024; B=2.
    B, C, H, W = 2, 4, 16, 16
    F = C * H * W

    x = jax.random.normal(k_x, (B, C, H, W), dtype=jnp.float32)

    # Parameters: __init__ gives mean=zeros(F), w=eye(F). Perturb them
    # deterministically so the kernel is exercised non-trivially (as if after
    # .fit()), keeping the exact __init__ shapes.
    mean = 0.1 * jax.random.normal(k_m, (F,), dtype=jnp.float32)
    w = jnp.eye(F, dtype=jnp.float32) + 0.05 * jax.random.normal(
        k_w, (F, F), dtype=jnp.float32
    )

    # Default path: bf16 W streaming, f32 accumulation, f32 output.
    y = whiten_forward(x, mean, w)
    y = jax.block_until_ready(y)

    # Exact f32 reference (matches torch.mm(X.flatten(1)-mean, w.T)).
    y_exact = (x.reshape(B, -1) - mean) @ w.T

    # Reference with matching numerics (bf16 operands, f32 accumulation).
    xm_bf = (x.reshape(B, -1) - mean).astype(jnp.bfloat16)
    y_ref_bf = jnp.dot(xm_bf, w.T.astype(jnp.bfloat16),
                       preferred_element_type=jnp.float32)

    assert y.shape == (B, F)
    assert jnp.allclose(y, y_ref_bf, atol=2e-2, rtol=2e-2), \
        "mismatch vs bf16-quantized reference"
    assert jnp.allclose(y, y_exact, atol=2.5e-1, rtol=5e-2), \
        "mismatch vs exact reference (beyond expected bf16 rounding)"

    # Full-precision path (w_dtype=None): tight tolerance vs exact reference.
    y32 = whiten_forward(x, mean, w, w_dtype=None)
    y32 = jax.block_until_ready(y32)
    assert jnp.allclose(y32, y_exact, atol=1e-4, rtol=1e-4), \
        "mismatch vs reference (f32 path)"

    print("KERNEL_OK")
</pallas_src>

<mosaic_0001>
module attributes {stable_mosaic.version = 11 : i64} {
  func.func @_whiten_kernel(%arg0: i32, %arg1: i32, %arg2: i32, %arg3: memref<8x1024xf32, #tpu.memory_space<vmem>>, %arg4: memref<1x1024xf32, #tpu.memory_space<vmem>>, %arg5: memref<1024x512xbf16, #tpu.memory_space<vmem>>, %arg6: memref<8x512xf32, #tpu.memory_space<vmem>>, %arg7: memref<8x512xf32, #tpu.memory_space<vmem>>) attributes {dimension_semantics = [#tpu.dimension_semantics<parallel>, #tpu.dimension_semantics<parallel>, #tpu.dimension_semantics<arbitrary>], iteration_bounds = array<i64: 1, 2, 1>, scalar_prefetch = 0 : i64, scratch_operands = 1 : i64, tpu.core_type = #tpu.core_type<tc>, window_params = [{transform_indices = @transform_0, window_bounds = array<i64: 8, 1024>}, {pipeline_mode = #tpu.pipeline_mode<synchronous>, transform_indices = @transform_1, window_bounds = array<i64: 1, 1024>}, {transform_indices = @transform_2, window_bounds = array<i64: 1024, 512>}, {transform_indices = @transform_3, window_bounds = array<i64: 8, 512>}]} {
    %c1024_i32 = arith.constant 1024 : i32
    %0 = arith.muli %arg2, %c1024_i32 : i32
    %1 = tpu.assume_multiple %0, 128 : i32
    %c0 = arith.constant 0 : index
    %2 = arith.index_cast %1 : i32 to index
    %3 = vector.load %arg3[%c0, %2] : memref<8x1024xf32, #tpu.memory_space<vmem>>, vector<8x1024xf32>
    %c0_0 = arith.constant 0 : index
    %4 = arith.index_cast %1 : i32 to index
    %5 = vector.load %arg4[%c0_0, %4] : memref<1x1024xf32, #tpu.memory_space<vmem>>, vector<1x1024xf32>
    %6 = vector.broadcast %5 : vector<1x1024xf32> to vector<8x1024xf32>
    %7 = arith.subf %3, %6 : vector<8x1024xf32>
    %8 = arith.truncf %7 : vector<8x1024xf32> to vector<8x1024xbf16>
    %c0_1 = arith.constant 0 : index
    %c0_2 = arith.constant 0 : index
    %9 = vector.load %arg5[%c0_1, %c0_2] : memref<1024x512xbf16, #tpu.memory_space<vmem>>, vector<1024x512xbf16>
    %cst = arith.constant dense<0.000000e+00> : vector<8x512xf32>
    %10 = tpu.matmul %8, %9, %cst {dimension_numbers = #tpu.dot_dimension_numbers<[1], [0], [0], [1], [0, 0, 1, 1], [], []>} : vector<8x1024xbf16>, vector<1024x512xbf16>, vector<8x512xf32> -> vector<8x512xf32>
    %c0_i32 = arith.constant 0 : i32
    %11 = arith.cmpi eq, %arg2, %c0_i32 : i32
    %12 = arith.extui %11 : i1 to i32
    %c0_i32_3 = arith.constant 0 : i32
    %13 = arith.cmpi ne, %12, %c0_i32_3 : i32
    scf.if %13 {
      %c0_8 = arith.constant 0 : index
      %c0_9 = arith.constant 0 : index
      %20 = vector.load %arg7[%c0_8, %c0_9] : memref<8x512xf32, #tpu.memory_space<vmem>>, vector<8x512xf32>
      tpu.vector_store %arg7[%c0_8, %c0_9], %10 {strides = array<i32>} : memref<8x512xf32, #tpu.memory_space<vmem>>, vector<8x512xf32>,
    } else {
    }
    %c0_i32_4 = arith.constant 0 : i32
    %14 = arith.cmpi ne, %arg2, %c0_i32_4 : i32
    %15 = arith.extui %14 : i1 to i32
    %c0_i32_5 = arith.constant 0 : i32
    %16 = arith.cmpi ne, %15, %c0_i32_5 : i32
    scf.if %16 {
      %c0_8 = arith.constant 0 : index
      %c0_9 = arith.constant 0 : index
      %20 = vector.load %arg7[%c0_8, %c0_9] : memref<8x512xf32, #tpu.memory_space<vmem>>, vector<8x512xf32>
      %21 = arith.addf %20, %10 : vector<8x512xf32>
      %c0_10 = arith.constant 0 : index
      %c0_11 = arith.constant 0 : index
      %22 = vector.load %arg7[%c0_10, %c0_11] : memref<8x512xf32, #tpu.memory_space<vmem>>, vector<8x512xf32>
      tpu.vector_store %arg7[%c0_10, %c0_11], %21 {strides = array<i32>} : memref<8x512xf32, #tpu.memory_space<vmem>>, vector<8x512xf32>,
    } else {
    }
    %c0_i32_6 = arith.constant 0 : i32
    %17 = arith.cmpi eq, %arg2, %c0_i32_6 : i32
    %18 = arith.extui %17 : i1 to i32
    %c0_i32_7 = arith.constant 0 : i32
    %19 = arith.cmpi ne, %18, %c0_i32_7 : i32
    scf.if %19 {
      %c0_8 = arith.constant 0 : index
      %c0_9 = arith.constant 0 : index
      %20 = vector.load %arg7[%c0_8, %c0_9] : memref<8x512xf32, #tpu.memory_space<vmem>>, vector<8x512xf32>
      %c0_10 = arith.constant 0 : index
      %c0_11 = arith.constant 0 : index
      %21 = vector.load %arg6[%c0_10, %c0_11] : memref<8x512xf32, #tpu.memory_space<vmem>>, vector<8x512xf32>
      tpu.vector_store %arg6[%c0_10, %c0_11], %20 {strides = array<i32>} : memref<8x512xf32, #tpu.memory_space<vmem>>, vector<8x512xf32>,
    } else {
    }
    return
  }
  func.func @transform_0(%arg0: i32, %arg1: i32, %arg2: i32) -> (i32, i32) {
    %c0_i32 = arith.constant 0 : i32
    %c0_i32_0 = arith.constant 0 : i32
    return %arg0, %c0_i32 : i32, i32
  }
  func.func @transform_1(%arg0: i32, %arg1: i32, %arg2: i32) -> (i32, i32) {
    %c0_i32 = arith.constant 0 : i32
    %c0_i32_0 = arith.constant 0 : i32
    %c0_i32_1 = arith.constant 0 : i32
    return %c0_i32, %c0_i32_0 : i32, i32
  }
  func.func @transform_2(%arg0: i32, %arg1: i32, %arg2: i32) -> (i32, i32) {
    %c0_i32 = arith.constant 0 : i32
    return %arg2, %arg1 : i32, i32
  }
  func.func @transform_3(%arg0: i32, %arg1: i32, %arg2: i32) -> (i32, i32) {
    %c0_i32 = arith.constant 0 : i32
    return %arg0, %arg1 : i32, i32
  }
}

</mosaic_0001>

<llo_original>
// kernel: tpu_custom_call.1
$region0: #{tpu_custom_call.1}
  #allocation0 [shape = 'u32[]', space=smem, size = 0x4, offset = 0x4, fixed_abs, tag = 'smem constant byte address 0x4 - core index']
  #allocation1 [shape = 'u32[72,128]{1,0:T(1,128)}', space=vmem, size = 0x9000, scoped, tag = 'internal scratch']
  #allocation2 [shape = 'f32[8,512]{1,0:T(8,128)}', space=vmem, size = 0x4000, scoped, tag = 'scratch operand']
  %s0 = inlined_call_operand.hbm [shape: f32[8,1024], index: 0, kind: input, shape index: {}]
  %s1 = inlined_call_operand.hbm [shape: f32[1,1024], index: 1, kind: input, shape index: {}]
  %s2 = inlined_call_operand.hbm [shape: bf16[1024,1024], index: 2, kind: input, shape index: {}]
  %s3 = inlined_call_operand.hbm [shape: f32[8,1024], index: 3, kind: output, shape index: {}]
  %s4 = sld [smem:[#allocation0]]
  $region69: #{tpu_custom_call.1} parent=0
    _
  %s6 = ssub.s32 1, %s4
  %s7 = scalar_select 0, %s6, %s4
  $region1: #{tpu_custom_call.1} parent=0
    #allocation3 [shape = 'u8[32768]{0}', space=vmem, size = 0x8000, scoped, tag = 'input window, operand 0, single buffered']
    #allocation4 [shape = 's32[2]{0}', space=sflag, size = 0x8, scoped, tag = 'scoped memory for tpu_custom_call.1']
    #allocation5 [shape = 's32[2]{0}', space=sflag, size = 0x8, scoped, tag = 'scoped memory for tpu_custom_call.1']
    #allocation6 [shape = 'u8[4096]{0}', space=vmem, size = 0x1000, scoped, tag = 'input window, operand 1, single buffered']
    #allocation7 [shape = 's32[1]{0}', space=sflag, size = 0x4, scoped, tag = 'scoped memory for tpu_custom_call.1']
    #allocation8 [shape = 'u8[2097152]{0}', space=vmem, size = 0x200000, scoped, tag = 'input window, operand 2']
    #allocation9 [shape = 'u8[32768]{0}', space=vmem, size = 0x8000, scoped, tag = 'output window, operand 0']
    %8 = vsyncpa [#allocation4], 0
    %9 = vsyncpa [#allocation7], 0
    %10 = vsyncpa [#allocation5], 0
    %s11 = scalar_lea.sflag [#allocation5], 1
    %12 = vsyncpa %s11, 0
    loop: start=0, step=1, limit=4
    $region2: #{tpu_custom_call.1} parent=1 // loop_pre_header
      _
    $region3: #{tpu_custom_call.1} parent=1 // loop_header
      %s14 = sphi 0, %s18
      %p15 = scmp.ge.s32.totalorder %s14, 4
      %s21 = sphi 0, %s40
      %s22 = sphi 0, %s36
      %s23 = sphi 0, %s32
      %s24 = sphi 0, %s21
      %s25 = sphi 0, %s22
      %s26 = sphi 0, %s23
      %s27 = sphi 0, %s24
      %s28 = sphi 0, %s25
      %s29 = sphi 0, %s26
      %s43 = sphi 0, %s45
      %s46 = sphi 0, %s43
      %s47 = sphi 0, %s46
      %s63 = sphi 0, %s47
      %s67 = sphi 0, %s67
      %s69 = sphi 0, %s67
      %s70 = sphi 0, %s69
      %s84 = sphi 0, %s70
      %s92 = sphi 0, %s94
      %s95 = sphi 0, %s92
      %s96 = sphi 0, %s95
      %s112 = sphi 0, %s96
      %s120 = sphi 0, %s122
      %s123 = sphi 0, %s120
      %s124 = sphi 0, %s123
      %s140 = sphi 0, %s124
    $region4: #{tpu_custom_call.1} parent=1 // loop_header_branch
      %17 = sbr.rel (%p15) target = $region8
    $region5: #{tpu_custom_call.1} parent=1 // loop_body
      %s19 = ssub.s32 %s14, 1
      %s20 = ssub.s32 %s14, 2
      %s30 = sadd.s32 1, %s23
      %p31 = scmp.ge.s32.totalorder %s30, 1
      %s32 = scalar_select %p31, 0, %s30
      %s33 = sadd.s32 1, %s22
      %s34 = scalar_select %p31, %s33, %s22
      %p35 = scmp.ge.s32.totalorder %s34, 2
      %s36 = scalar_select %p35, 0, %s34
      %s37 = sadd.s32 1, %s21
      %s38 = scalar_select %p35, %s37, %s21
      %p39 = scmp.ge.s32.totalorder %s38, 1
      %s40 = scalar_select %p39, 0, %s38
      %s41 = ssub.s32 %s21, %s40
      %p42 = scmp.eq.s32.totalorder %s41, 0
      %s44 = sadd.s32 %s43, 1
      %s45 = scalar_select %p42, %s43, %s44
      %p48 = pneg %p42
      %p49 = scmp.eq.s32.totalorder %s14, 1
      %p50 = por %p48, %p49
      %p51 = scmp.ne.s32.totalorder %s43, %s46
      %p52 = scmp.eq.s32.totalorder %s14, 0
      %p53 = por %p51, %p52
      %p54 = scmp.ne.s32.totalorder %s43, %s46
      %p55 = scmp.eq.s32.totalorder %s19, 1
      %p56 = por %p54, %p55
      %p57 = scmp.ne.s32.totalorder %s46, %s47
      %p58 = scmp.eq.s32.totalorder %s19, 0
      %p59 = por %p57, %p58
      %p60 = scmp.ne.s32.totalorder %s46, %s47
      %p61 = scmp.eq.s32.totalorder %s20, 1
      %p62 = por %p60, %p61
      %p64 = scmp.ne.s32.totalorder %s47, %s63
      %p65 = scmp.eq.s32.totalorder %s20, 0
      %p66 = por %p64, %p65
      %s68 = sadd.s32 %s67, 1
      %p71 = scmp.eq.s32.totalorder %s14, 1
      %p72 = scmp.ne.s32.totalorder %s67, %s69
      %p73 = scmp.eq.s32.totalorder %s14, 0
      %p74 = por %p72, %p73
      %p75 = scmp.ne.s32.totalorder %s67, %s69
      %p76 = scmp.eq.s32.totalorder %s19, 1
      %p77 = por %p75, %p76
      %p78 = scmp.ne.s32.totalorder %s69, %s70
      %p79 = scmp.eq.s32.totalorder %s19, 0
      %p80 = por %p78, %p79
      %p81 = scmp.ne.s32.totalorder %s69, %s70
      %p82 = scmp.eq.s32.totalorder %s20, 1
      %p83 = por %p81, %p82
      %p85 = scmp.ne.s32.totalorder %s70, %s84
      %p86 = scmp.eq.s32.totalorder %s20, 0
      %p87 = por %p85, %p86
      %s88 = ssub.s32 %s23, %s32
      %s89 = ssub.s32 %s22, %s36
      %s90 = sor.u32 %s88, %s89
      %p91 = scmp.eq.s32.totalorder %s90, 0
      %s93 = sadd.s32 %s92, 1
      %s94 = scalar_select %p91, %s92, %s93
      %p97 = pneg %p91
      %p98 = scmp.eq.s32.totalorder %s14, 1
      %p99 = por %p97, %p98
      %p100 = scmp.ne.s32.totalorder %s92, %s95
      %p101 = scmp.eq.s32.totalorder %s14, 0
      %p102 = por %p100, %p101
      %p103 = scmp.ne.s32.totalorder %s92, %s95
      %p104 = scmp.eq.s32.totalorder %s19, 1
      %p105 = por %p103, %p104
      %p106 = scmp.ne.s32.totalorder %s95, %s96
      %p107 = scmp.eq.s32.totalorder %s19, 0
      %p108 = por %p106, %p107
      %p109 = scmp.ne.s32.totalorder %s95, %s96
      %p110 = scmp.eq.s32.totalorder %s20, 1
      %p111 = por %p109, %p110
      %p113 = scmp.ne.s32.totalorder %s96, %s112
      %p114 = scmp.eq.s32.totalorder %s20, 0
      %p115 = por %p113, %p114
      %s116 = ssub.s32 %s21, %s40
      %s117 = ssub.s32 %s22, %s36
      %s118 = sor.u32 %s116, %s117
      %p119 = scmp.eq.s32.totalorder %s118, 0
      %s121 = sadd.s32 %s120, 1
      %s122 = scalar_select %p119, %s120, %s121
      %p125 = pneg %p119
      %p126 = scmp.eq.s32.totalorder %s14, 1
      %p127 = por %p125, %p126
      %p128 = scmp.ne.s32.totalorder %s120, %s123
      %p129 = scmp.eq.s32.totalorder %s14, 0
      %p130 = por %p128, %p129
      %p131 = scmp.ne.s32.totalorder %s120, %s123
      %p132 = scmp.eq.s32.totalorder %s19, 1
      %p133 = por %p131, %p132
      %p134 = scmp.ne.s32.totalorder %s123, %s124
      %p135 = scmp.eq.s32.totalorder %s19, 0
      %p136 = por %p134, %p135
      %p137 = scmp.ne.s32.totalorder %s123, %s124
      %p138 = scmp.eq.s32.totalorder %s20, 1
      %p139 = por %p137, %p138
      %p141 = scmp.ne.s32.totalorder %s124, %s140
      %p142 = scmp.eq.s32.totalorder %s20, 0
      %p143 = por %p141, %p142
      %p144 = scmp.le.s32.totalorder 1, %s14
      %p145 = scmp.lt.s32.totalorder %s14, 3
      %p146 = pnand %p144, %p145
      %p147 = pneg %p146
      // Predicated region
      $region9: #{tpu_custom_call.1} parent=5 // pred_check
        _
      $region10: #{tpu_custom_call.1} parent=5 // pred_check_branch
        %149 = sbr.rel (%p146) target = $region12
      $region11: #{tpu_custom_call.1} parent=5 // pred_region
        %s150 = ssub.s32 %s14, 1
        // Predicated region
        $region13: #{tpu_custom_call.1} parent=11 // pred_check
          %p151 = pneg %p59
        $region14: #{tpu_custom_call.1} parent=11 // pred_check_branch
          %153 = sbr.rel (%p151) target = $region16
        $region15: #{tpu_custom_call.1} parent=11 // pred_region
          %155 = vsyncadd [#allocation4], 0
          %s156 = smul.addr %s24, 8
          %s157 = smul.addr %s156, 8
          %s158 = scalar_lea.hbm %s0, %s157
          %s160 = sshll.u32 %s158, 4
          %s161 = int_to_ptr.hbm [resolvable:$true] %s160
          %s162 = sshll.u32 [#allocation3], 4
          %s163 = int_to_ptr.vmem [resolvable:$true] %s162
          %165 = dma.hbm_to_vmem [thread:$0]  %s161, 1024, %s163, [#allocation4]
        $region16: #{tpu_custom_call.1} parent=11 // pred_fallthru
          _
        // Predicated region
        $region17: #{tpu_custom_call.1} parent=11 // pred_check
          %p166 = pneg %p80
        $region18: #{tpu_custom_call.1} parent=11 // pred_check_branch
          %168 = sbr.rel (%p166) target = $region20
        $region19: #{tpu_custom_call.1} parent=11 // pred_region
          %170 = vsyncadd [#allocation7], 0
          %s172 = sshll.u32 %s1, 4
          %s173 = int_to_ptr.hbm [resolvable:$true] %s172
          %s174 = sshll.u32 [#allocation6], 4
          %s175 = int_to_ptr.vmem [resolvable:$true] %s174
          %177 = dma.hbm_to_vmem [thread:$0]  %s173, 128, %s175, [#allocation7]
        $region20: #{tpu_custom_call.1} parent=11 // pred_fallthru
          _
      $region12: #{tpu_custom_call.1} parent=5 // pred_fallthru
        _
      %p178 = scmp.lt.s32.totalorder %s14, 2
      // Predicated region
      $region21: #{tpu_custom_call.1} parent=5 // pred_check
        %p179 = pneg %p178
      $region22: #{tpu_custom_call.1} parent=5 // pred_check_branch
        %181 = sbr.rel (%p179) target = $region24
      $region23: #{tpu_custom_call.1} parent=5 // pred_region
        // Predicated region
        $region25: #{tpu_custom_call.1} parent=23 // pred_check
          %p182 = pneg %p102
        $region26: #{tpu_custom_call.1} parent=23 // pred_check_branch
          %184 = sbr.rel (%p182) target = $region28
        $region27: #{tpu_custom_call.1} parent=23 // pred_region
          %s185 = sand.u32 %s14, 1
          %s186 = scalar_lea.sflag [#allocation4], %s185
          %s187 = sand.u32 %s92, 1
          %s188 = smul.addr %s187, 2048
          %s189 = scalar_lea.vmem [#allocation8], %s188
          %s190 = smul.u32 128, %s23
          %s191 = smul.u32 4, %s22
          %193 = vsyncadd %s186, 0
          %s194 = smul.addr %s190, 8
          %s195 = sadd.s32 %s191, %s194
          %s196 = smul.addr %s195, 4
          %s197 = scalar_lea.hbm %s2, %s196
          %s198 = sshll.u32 %s197, 4
          %s199 = int_to_ptr.hbm [resolvable:$true] %s198
          %s200 = sshll.u32 %s189, 4
          %s201 = int_to_ptr.vmem [resolvable:$true] %s200
          %206 = dma.hbm_to_vmem [thread:$0]  %s199, 32768, %s201, %s186, 512, 256, 16
        $region28: #{tpu_custom_call.1} parent=23 // pred_fallthru
          _
      $region24: #{tpu_custom_call.1} parent=5 // pred_fallthru
        _
      %p207 = scmp.le.s32.totalorder 1, %s14
      %p208 = scmp.lt.s32.totalorder %s14, 3
      %p209 = pnand %p207, %p208
      %p210 = pneg %p209
      // Predicated region
      $region29: #{tpu_custom_call.1} parent=5 // pred_check
        _
      $region30: #{tpu_custom_call.1} parent=5 // pred_check_branch
        %212 = sbr.rel (%p209) target = $region32
      $region31: #{tpu_custom_call.1} parent=5 // pred_region
        %s213 = ssub.s32 %s14, 1
        // Predicated region
        $region33: #{tpu_custom_call.1} parent=31 // pred_check
          %p214 = pneg %p59
        $region34: #{tpu_custom_call.1} parent=31 // pred_check_branch
          %216 = sbr.rel (%p214) target = $region36
        $region35: #{tpu_custom_call.1} parent=31 // pred_region
          %218 = dma.done [#allocation4], 1024
        $region36: #{tpu_custom_call.1} parent=31 // pred_fallthru
          _
        // Predicated region
        $region37: #{tpu_custom_call.1} parent=31 // pred_check
          %p219 = pneg %p80
        $region38: #{tpu_custom_call.1} parent=31 // pred_check_branch
          %221 = sbr.rel (%p219) target = $region40
        $region39: #{tpu_custom_call.1} parent=31 // pred_region
          %223 = dma.done [#allocation7], 128
        $region40: #{tpu_custom_call.1} parent=31 // pred_fallthru
          _
        %s224 = sand.u32 %s19, 1
        %s225 = scalar_lea.sflag [#allocation4], %s224
        %s226 = sand.u32 %s95, 1
        %s227 = smul.addr %s226, 2048
        %s228 = scalar_lea.vmem [#allocation8], %s227
        // Predicated region
        $region41: #{tpu_custom_call.1} parent=31 // pred_check
          %p229 = pneg %p108
        $region42: #{tpu_custom_call.1} parent=31 // pred_check_branch
          %231 = sbr.rel (%p229) target = $region44
        $region43: #{tpu_custom_call.1} parent=31 // pred_region
          %233 = dma.done %s225, 32768
        $region44: #{tpu_custom_call.1} parent=31 // pred_fallthru
          _
        %p234 = pneg %p59
        %p235 = pneg %p56
        %p236 = pneg %p80
        %p237 = pneg %p77
        %s238 = sand.u32 %s19, 1
        %s239 = scalar_lea.sflag [#allocation4], %s238
        %s240 = sand.u32 %s95, 1
        %s241 = smul.addr %s240, 2048
        %s242 = scalar_lea.vmem [#allocation8], %s241
        %p243 = pneg %p108
        %p244 = pneg %p105
        %p245 = pneg %p136
        %p246 = pneg %p133
        %s247 = sand.u32 %s123, 1
        %s248 = scalar_lea.sflag [#allocation5], %s247
        %s249 = sand.u32 %s123, 1
        %s250 = smul.addr %s249, 32
        %s251 = scalar_lea.vmem [#allocation9], %s250
        %s252 = smul.u32 128, %s26
        %s253 = smul.u32 4, %s25
        %s254 = smul.u32 4, %s25
        %s255 = smul.u32 %s26, 1024
        %s256 = sshra.s32 %s255, 7
        %s257 = sand.u32 %s255, 127
        %s258 = smul.addr %s256, 8
        %s259 = scalar_lea.vmem [#allocation3], %s258
        %v260 = vld [vmem:[%s259] sm:$0xff]
        %v261 = vld [vmem:[%s259 + $0x8] sm:$0xff]
        %v262 = vld [vmem:[%s259 + $0x10] sm:$0xff]
        %v263 = vld [vmem:[%s259 + $0x18] sm:$0xff]
        %v264 = vld [vmem:[%s259 + $0x20] sm:$0xff]
        %v265 = vld [vmem:[%s259 + $0x28] sm:$0xff]
        %v266 = vld [vmem:[%s259 + $0x30] sm:$0xff]
        %v267 = vld [vmem:[%s259 + $0x38] sm:$0xff]
        %s268 = scalar_lea.vmem [#allocation6], %s256
        %v269 = vld [vmem:[%s268] sm:$0xff]
        %v271 = vperm.slane %v269, 0
        %v272 = vperm.slane %v269, 1
        %v273 = vperm.slane %v269, 2
        %v274 = vperm.slane %v269, 3
        %v275 = vperm.slane %v269, 4
        %v276 = vperm.slane %v269, 5
        %v277 = vperm.slane %v269, 6
        %v278 = vperm.slane %v269, 7
        %v287 = vsub.f32 %v260, %v271
        %v288 = vsub.f32 %v261, %v272
        %v289 = vsub.f32 %v262, %v273
        %v290 = vsub.f32 %v263, %v274
        %v291 = vsub.f32 %v264, %v275
        %v292 = vsub.f32 %v265, %v276
        %v293 = vsub.f32 %v266, %v277
        %v294 = vsub.f32 %v267, %v278
        %v295 = vpack.c.bf16 %v287, %v287
        %v296 = vpack.c.bf16 %v288, %v288
        %v297 = vpack.c.bf16 %v289, %v289
        %v298 = vpack.c.bf16 %v290, %v290
        %v299 = vpack.c.bf16 %v291, %v291
        %v300 = vpack.c.bf16 %v292, %v292
        %v301 = vpack.c.bf16 %v293, %v293
        %v302 = vpack.c.bf16 %v294, %v294
        %v303 = vld [vmem:[%s228] sm:$0xff]
        %v304 = vld [vmem:[%s228 + $0x8] sm:$0xff]
        %v305 = vld [vmem:[%s228 + $0x10] sm:$0xff]
        %v306 = vld [vmem:[%s228 + $0x18] sm:$0xff]
        %v307 = vld [vmem:[%s228 + $0x20] sm:$0xff]
        %v308 = vld [vmem:[%s228 + $0x28] sm:$0xff]
        %v309 = vld [vmem:[%s228 + $0x30] sm:$0xff]
        %v310 = vld [vmem:[%s228 + $0x38] sm:$0xff]
        %v311 = vld [vmem:[%s228 + $0x40] sm:$0xff]
        %v312 = vld [vmem:[%s228 + $0x48] sm:$0xff]
        %v313 = vld [vmem:[%s228 + $0x50] sm:$0xff]
        %v314 = vld [vmem:[%s228 + $0x58] sm:$0xff]
        %v315 = vld [vmem:[%s228 + $0x60] sm:$0xff]
        %v316 = vld [vmem:[%s228 + $0x68] sm:$0xff]
        %v317 = vld [vmem:[%s228 + $0x70] sm:$0xff]
        %v318 = vld [vmem:[%s228 + $0x78] sm:$0xff]
        %v319 = vld [vmem:[%s228 + $0x80] sm:$0xff]
        %v320 = vld [vmem:[%s228 + $0x88] sm:$0xff]
        %v321 = vld [vmem:[%s228 + $0x90] sm:$0xff]
        %v322 = vld [vmem:[%s228 + $0x98] sm:$0xff]
        %v323 = vld [vmem:[%s228 + $0xa0] sm:$0xff]
        %v324 = vld [vmem:[%s228 + $0xa8] sm:$0xff]
        %v325 = vld [vmem:[%s228 + $0xb0] sm:$0xff]
        %v326 = vld [vmem:[%s228 + $0xb8] sm:$0xff]
        %v327 = vld [vmem:[%s228 + $0xc0] sm:$0xff]
        %v328 = vld [vmem:[%s228 + $0xc8] sm:$0xff]
        %v329 = vld [vmem:[%s228 + $0xd0] sm:$0xff]
        %v330 = vld [vmem:[%s228 + $0xd8] sm:$0xff]
        %v331 = vld [vmem:[%s228 + $0xe0] sm:$0xff]
        %v332 = vld [vmem:[%s228 + $0xe8] sm:$0xff]
        %v333 = vld [vmem:[%s228 + $0xf0] sm:$0xff]
        %v334 = vld [vmem:[%s228 + $0xf8] sm:$0xff]
        %v335 = vld [vmem:[%s228 + $0x100] sm:$0xff]
        %v336 = vld [vmem:[%s228 + $0x108] sm:$0xff]
        %v337 = vld [vmem:[%s228 + $0x110] sm:$0xff]
        %v338 = vld [vmem:[%s228 + $0x118] sm:$0xff]
        %v339 = vld [vmem:[%s228 + $0x120] sm:$0xff]
        %v340 = vld [vmem:[%s228 + $0x128] sm:$0xff]
        %v341 = vld [vmem:[%s228 + $0x130] sm:$0xff]
        %v342 = vld [vmem:[%s228 + $0x138] sm:$0xff]
        %v343 = vld [vmem:[%s228 + $0x140] sm:$0xff]
        %v344 = vld [vmem:[%s228 + $0x148] sm:$0xff]
        %v345 = vld [vmem:[%s228 + $0x150] sm:$0xff]
        %v346 = vld [vmem:[%s228 + $0x158] sm:$0xff]
        %v347 = vld [vmem:[%s228 + $0x160] sm:$0xff]
        %v348 = vld [vmem:[%s228 + $0x168] sm:$0xff]
        %v349 = vld [vmem:[%s228 + $0x170] sm:$0xff]
        %v350 = vld [vmem:[%s228 + $0x178] sm:$0xff]
        %v351 = vld [vmem:[%s228 + $0x180] sm:$0xff]
        %v352 = vld [vmem:[%s228 + $0x188] sm:$0xff]
        %v353 = vld [vmem:[%s228 + $0x190] sm:$0xff]
        %v354 = vld [vmem:[%s228 + $0x198] sm:$0xff]
        %v355 = vld [vmem:[%s228 + $0x1a0] sm:$0xff]
        %v356 = vld [vmem:[%s228 + $0x1a8] sm:$0xff]
        %v357 = vld [vmem:[%s228 + $0x1b0] sm:$0xff]
        %v358 = vld [vmem:[%s228 + $0x1b8] sm:$0xff]
        %v359 = vld [vmem:[%s228 + $0x1c0] sm:$0xff]
        %v360 = vld [vmem:[%s228 + $0x1c8] sm:$0xff]
        %v361 = vld [vmem:[%s228 + $0x1d0] sm:$0xff]
        %v362 = vld [vmem:[%s228 + $0x1d8] sm:$0xff]
        %v363 = vld [vmem:[%s228 + $0x1e0] sm:$0xff]
        %v364 = vld [vmem:[%s228 + $0x1e8] sm:$0xff]
        %v365 = vld [vmem:[%s228 + $0x1f0] sm:$0xff]
        %v366 = vld [vmem:[%s228 + $0x1f8] sm:$0xff]
        %v367 = vld [vmem:[%s228 + $0x200] sm:$0xff]
        %v368 = vld [vmem:[%s228 + $0x208] sm:$0xff]
        %v369 = vld [vmem:[%s228 + $0x210] sm:$0xff]
        %v370 = vld [vmem:[%s228 + $0x218] sm:$0xff]
        %v371 = vld [vmem:[%s228 + $0x220] sm:$0xff]
        %v372 = vld [vmem:[%s228 + $0x228] sm:$0xff]
        %v373 = vld [vmem:[%s228 + $0x230] sm:$0xff]
        %v374 = vld [vmem:[%s228 + $0x238] sm:$0xff]
        %v375 = vld [vmem:[%s228 + $0x240] sm:$0xff]
        %v376 = vld [vmem:[%s228 + $0x248] sm:$0xff]
        %v377 = vld [vmem:[%s228 + $0x250] sm:$0xff]
        %v378 = vld [vmem:[%s228 + $0x258] sm:$0xff]
        %v379 = vld [vmem:[%s228 + $0x260] sm:$0xff]
        %v380 = vld [vmem:[%s228 + $0x268] sm:$0xff]
        %v381 = vld [vmem:[%s228 + $0x270] sm:$0xff]
        %v382 = vld [vmem:[%s228 + $0x278] sm:$0xff]
        %v383 = vld [vmem:[%s228 + $0x280] sm:$0xff]
        %v384 = vld [vmem:[%s228 + $0x288] sm:$0xff]
        %v385 = vld [vmem:[%s228 + $0x290] sm:$0xff]
        %v386 = vld [vmem:[%s228 + $0x298] sm:$0xff]
        %v387 = vld [vmem:[%s228 + $0x2a0] sm:$0xff]
        %v388 = vld [vmem:[%s228 + $0x2a8] sm:$0xff]
        %v389 = vld [vmem:[%s228 + $0x2b0] sm:$0xff]
        %v390 = vld [vmem:[%s228 + $0x2b8] sm:$0xff]
        %v391 = vld [vmem:[%s228 + $0x2c0] sm:$0xff]
        %v392 = vld [vmem:[%s228 + $0x2c8] sm:$0xff]
        %v393 = vld [vmem:[%s228 + $0x2d0] sm:$0xff]
        %v394 = vld [vmem:[%s228 + $0x2d8] sm:$0xff]
        %v395 = vld [vmem:[%s228 + $0x2e0] sm:$0xff]
        %v396 = vld [vmem:[%s228 + $0x2e8] sm:$0xff]
        %v397 = vld [vmem:[%s228 + $0x2f0] sm:$0xff]
        %v398 = vld [vmem:[%s228 + $0x2f8] sm:$0xff]
        %v399 = vld [vmem:[%s228 + $0x300] sm:$0xff]
        %v400 = vld [vmem:[%s228 + $0x308] sm:$0xff]
        %v401 = vld [vmem:[%s228 + $0x310] sm:$0xff]
        %v402 = vld [vmem:[%s228 + $0x318] sm:$0xff]
        %v403 = vld [vmem:[%s228 + $0x320] sm:$0xff]
        %v404 = vld [vmem:[%s228 + $0x328] sm:$0xff]
        %v405 = vld [vmem:[%s228 + $0x330] sm:$0xff]
        %v406 = vld [vmem:[%s228 + $0x338] sm:$0xff]
        %v407 = vld [vmem:[%s228 + $0x340] sm:$0xff]
        %v408 = vld [vmem:[%s228 + $0x348] sm:$0xff]
        %v409 = vld [vmem:[%s228 + $0x350] sm:$0xff]
        %v410 = vld [vmem:[%s228 + $0x358] sm:$0xff]
        %v411 = vld [vmem:[%s228 + $0x360] sm:$0xff]
        %v412 = vld [vmem:[%s228 + $0x368] sm:$0xff]
        %v413 = vld [vmem:[%s228 + $0x370] sm:$0xff]
        %v414 = vld [vmem:[%s228 + $0x378] sm:$0xff]
        %v415 = vld [vmem:[%s228 + $0x380] sm:$0xff]
        %v416 = vld [vmem:[%s228 + $0x388] sm:$0xff]
        %v417 = vld [vmem:[%s228 + $0x390] sm:$0xff]
        %v418 = vld [vmem:[%s228 + $0x398] sm:$0xff]
        %v419 = vld [vmem:[%s228 + $0x3a0] sm:$0xff]
        %v420 = vld [vmem:[%s228 + $0x3a8] sm:$0xff]
        %v421 = vld [vmem:[%s228 + $0x3b0] sm:$0xff]
        %v422 = vld [vmem:[%s228 + $0x3b8] sm:$0xff]
        %v423 = vld [vmem:[%s228 + $0x3c0] sm:$0xff]
        %v424 = vld [vmem:[%s228 + $0x3c8] sm:$0xff]
        %v425 = vld [vmem:[%s228 + $0x3d0] sm:$0xff]
        %v426 = vld [vmem:[%s228 + $0x3d8] sm:$0xff]
        %v427 = vld [vmem:[%s228 + $0x3e0] sm:$0xff]
        %v428 = vld [vmem:[%s228 + $0x3e8] sm:$0xff]
        %v429 = vld [vmem:[%s228 + $0x3f0] sm:$0xff]
        %v430 = vld [vmem:[%s228 + $0x3f8] sm:$0xff]
        %v431 = vld [vmem:[%s228 + $0x400] sm:$0xff]
        %v432 = vld [vmem:[%s228 + $0x408] sm:$0xff]
        %v433 = vld [vmem:[%s228 + $0x410] sm:$0xff]
        %v434 = vld [vmem:[%s228 + $0x418] sm:$0xff]
        %v435 = vld [vmem:[%s228 + $0x420] sm:$0xff]
        %v436 = vld [vmem:[%s228 + $0x428] sm:$0xff]
        %v437 = vld [vmem:[%s228 + $0x430] sm:$0xff]
        %v438 = vld [vmem:[%s228 + $0x438] sm:$0xff]
        %v439 = vld [vmem:[%s228 + $0x440] sm:$0xff]
        %v440 = vld [vmem:[%s228 + $0x448] sm:$0xff]
        %v441 = vld [vmem:[%s228 + $0x450] sm:$0xff]
        %v442 = vld [vmem:[%s228 + $0x458] sm:$0xff]
        %v443 = vld [vmem:[%s228 + $0x460] sm:$0xff]
        %v444 = vld [vmem:[%s228 + $0x468] sm:$0xff]
        %v445 = vld [vmem:[%s228 + $0x470] sm:$0xff]
        %v446 = vld [vmem:[%s228 + $0x478] sm:$0xff]
        %v447 = vld [vmem:[%s228 + $0x480] sm:$0xff]
        %v448 = vld [vmem:[%s228 + $0x488] sm:$0xff]
        %v449 = vld [vmem:[%s228 + $0x490] sm:$0xff]
        %v450 = vld [vmem:[%s228 + $0x498] sm:$0xff]
        %v451 = vld [vmem:[%s228 + $0x4a0] sm:$0xff]
        %v452 = vld [vmem:[%s228 + $0x4a8] sm:$0xff]
        %v453 = vld [vmem:[%s228 + $0x4b0] sm:$0xff]
        %v454 = vld [vmem:[%s228 + $0x4b8] sm:$0xff]
        %v455 = vld [vmem:[%s228 + $0x4c0] sm:$0xff]
        %v456 = vld [vmem:[%s228 + $0x4c8] sm:$0xff]
        %v457 = vld [vmem:[%s228 + $0x4d0] sm:$0xff]
        %v458 = vld [vmem:[%s228 + $0x4d8] sm:$0xff]
        %v459 = vld [vmem:[%s228 + $0x4e0] sm:$0xff]
        %v460 = vld [vmem:[%s228 + $0x4e8] sm:$0xff]
        %v461 = vld [vmem:[%s228 + $0x4f0] sm:$0xff]
        %v462 = vld [vmem:[%s228 + $0x4f8] sm:$0xff]
        %v463 = vld [vmem:[%s228 + $0x500] sm:$0xff]
        %v464 = vld [vmem:[%s228 + $0x508] sm:$0xff]
        %v465 = vld [vmem:[%s228 + $0x510] sm:$0xff]
        %v466 = vld [vmem:[%s228 + $0x518] sm:$0xff]
        %v467 = vld [vmem:[%s228 + $0x520] sm:$0xff]
        %v468 = vld [vmem:[%s228 + $0x528] sm:$0xff]
        %v469 = vld [vmem:[%s228 + $0x530] sm:$0xff]
        %v470 = vld [vmem:[%s228 + $0x538] sm:$0xff]
        %v471 = vld [vmem:[%s228 + $0x540] sm:$0xff]
        %v472 = vld [vmem:[%s228 + $0x548] sm:$0xff]
        %v473 = vld [vmem:[%s228 + $0x550] sm:$0xff]
        %v474 = vld [vmem:[%s228 + $0x558] sm:$0xff]
        %v475 = vld [vmem:[%s228 + $0x560] sm:$0xff]
        %v476 = vld [vmem:[%s228 + $0x568] sm:$0xff]
        %v477 = vld [vmem:[%s228 + $0x570] sm:$0xff]
        %v478 = vld [vmem:[%s228 + $0x578] sm:$0xff]
        %v479 = vld [vmem:[%s228 + $0x580] sm:$0xff]
        %v480 = vld [vmem:[%s228 + $0x588] sm:$0xff]
        %v481 = vld [vmem:[%s228 + $0x590] sm:$0xff]
        %v482 = vld [vmem:[%s228 + $0x598] sm:$0xff]
        %v483 = vld [vmem:[%s228 + $0x5a0] sm:$0xff]
        %v484 = vld [vmem:[%s228 + $0x5a8] sm:$0xff]
        %v485 = vld [vmem:[%s228 + $0x5b0] sm:$0xff]
        %v486 = vld [vmem:[%s228 + $0x5b8] sm:$0xff]
        %v487 = vld [vmem:[%s228 + $0x5c0] sm:$0xff]
        %v488 = vld [vmem:[%s228 + $0x5c8] sm:$0xff]
        %v489 = vld [vmem:[%s228 + $0x5d0] sm:$0xff]
        %v490 = vld [vmem:[%s228 + $0x5d8] sm:$0xff]
        %v491 = vld [vmem:[%s228 + $0x5e0] sm:$0xff]
        %v492 = vld [vmem:[%s228 + $0x5e8] sm:$0xff]
        %v493 = vld [vmem:[%s228 + $0x5f0] sm:$0xff]
        %v494 = vld [vmem:[%s228 + $0x5f8] sm:$0xff]
        %v495 = vld [vmem:[%s228 + $0x600] sm:$0xff]
        %v496 = vld [vmem:[%s228 + $0x608] sm:$0xff]
        %v497 = vld [vmem:[%s228 + $0x610] sm:$0xff]
        %v498 = vld [vmem:[%s228 + $0x618] sm:$0xff]
        %v499 = vld [vmem:[%s228 + $0x620] sm:$0xff]
        %v500 = vld [vmem:[%s228 + $0x628] sm:$0xff]
        %v501 = vld [vmem:[%s228 + $0x630] sm:$0xff]
        %v502 = vld [vmem:[%s228 + $0x638] sm:$0xff]
        %v503 = vld [vmem:[%s228 + $0x640] sm:$0xff]
        %v504 = vld [vmem:[%s228 + $0x648] sm:$0xff]
        %v505 = vld [vmem:[%s228 + $0x650] sm:$0xff]
        %v506 = vld [vmem:[%s228 + $0x658] sm:$0xff]
        %v507 = vld [vmem:[%s228 + $0x660] sm:$0xff]
        %v508 = vld [vmem:[%s228 + $0x668] sm:$0xff]
        %v509 = vld [vmem:[%s228 + $0x670] sm:$0xff]
        %v510 = vld [vmem:[%s228 + $0x678] sm:$0xff]
        %v511 = vld [vmem:[%s228 + $0x680] sm:$0xff]
        %v512 = vld [vmem:[%s228 + $0x688] sm:$0xff]
        %v513 = vld [vmem:[%s228 + $0x690] sm:$0xff]
        %v514 = vld [vmem:[%s228 + $0x698] sm:$0xff]
        %v515 = vld [vmem:[%s228 + $0x6a0] sm:$0xff]
        %v516 = vld [vmem:[%s228 + $0x6a8] sm:$0xff]
        %v517 = vld [vmem:[%s228 + $0x6b0] sm:$0xff]
        %v518 = vld [vmem:[%s228 + $0x6b8] sm:$0xff]
        %v519 = vld [vmem:[%s228 + $0x6c0] sm:$0xff]
        %v520 = vld [vmem:[%s228 + $0x6c8] sm:$0xff]
        %v521 = vld [vmem:[%s228 + $0x6d0] sm:$0xff]
        %v522 = vld [vmem:[%s228 + $0x6d8] sm:$0xff]
        %v523 = vld [vmem:[%s228 + $0x6e0] sm:$0xff]
        %v524 = vld [vmem:[%s228 + $0x6e8] sm:$0xff]
        %v525 = vld [vmem:[%s228 + $0x6f0] sm:$0xff]
        %v526 = vld [vmem:[%s228 + $0x6f8] sm:$0xff]
        %v527 = vld [vmem:[%s228 + $0x700] sm:$0xff]
        %v528 = vld [vmem:[%s228 + $0x708] sm:$0xff]
        %v529 = vld [vmem:[%s228 + $0x710] sm:$0xff]
        %v530 = vld [vmem:[%s228 + $0x718] sm:$0xff]
        %v531 = vld [vmem:[%s228 + $0x720] sm:$0xff]
        %v532 = vld [vmem:[%s228 + $0x728] sm:$0xff]
        %v533 = vld [vmem:[%s228 + $0x730] sm:$0xff]
        %v534 = vld [vmem:[%s228 + $0x738] sm:$0xff]
        %v535 = vld [vmem:[%s228 + $0x740] sm:$0xff]
        %v536 = vld [vmem:[%s228 + $0x748] sm:$0xff]
        %v537 = vld [vmem:[%s228 + $0x750] sm:$0xff]
        %v538 = vld [vmem:[%s228 + $0x758] sm:$0xff]
        %v539 = vld [vmem:[%s228 + $0x760] sm:$0xff]
        %v540 = vld [vmem:[%s228 + $0x768] sm:$0xff]
        %v541 = vld [vmem:[%s228 + $0x770] sm:$0xff]
        %v542 = vld [vmem:[%s228 + $0x778] sm:$0xff]
        %v543 = vld [vmem:[%s228 + $0x780] sm:$0xff]
        %v544 = vld [vmem:[%s228 + $0x788] sm:$0xff]
        %v545 = vld [vmem:[%s228 + $0x790] sm:$0xff]
        %v546 = vld [vmem:[%s228 + $0x798] sm:$0xff]
        %v547 = vld [vmem:[%s228 + $0x7a0] sm:$0xff]
        %v548 = vld [vmem:[%s228 + $0x7a8] sm:$0xff]
        %v549 = vld [vmem:[%s228 + $0x7b0] sm:$0xff]
        %v550 = vld [vmem:[%s228 + $0x7b8] sm:$0xff]
        %v551 = vld [vmem:[%s228 + $0x7c0] sm:$0xff]
        %v552 = vld [vmem:[%s228 + $0x7c8] sm:$0xff]
        %v553 = vld [vmem:[%s228 + $0x7d0] sm:$0xff]
        %v554 = vld [vmem:[%s228 + $0x7d8] sm:$0xff]
        %v555 = vld [vmem:[%s228 + $0x7e0] sm:$0xff]
        %v556 = vld [vmem:[%s228 + $0x7e8] sm:$0xff]
        %v557 = vld [vmem:[%s228 + $0x7f0] sm:$0xff]
        %v558 = vld [vmem:[%s228 + $0x7f8] sm:$0xff]
        %v815 = vunpack.c.l.b16 %v303
        %v816 = vunpack.c.h.b16 %v303
        %v817 = vunpack.c.l.b16 %v304
        %v818 = vunpack.c.h.b16 %v304
        %v819 = vunpack.c.l.b16 %v305
        %v820 = vunpack.c.h.b16 %v305
        %v821 = vunpack.c.l.b16 %v306
        %v822 = vunpack.c.h.b16 %v306
        %v823 = vunpack.c.l.b16 %v307
        %v824 = vunpack.c.h.b16 %v307
        %v825 = vunpack.c.l.b16 %v308
        %v826 = vunpack.c.h.b16 %v308
        %v827 = vunpack.c.l.b16 %v309
        %v828 = vunpack.c.h.b16 %v309
        %v829 = vunpack.c.l.b16 %v310
        %v830 = vunpack.c.h.b16 %v310
        %v831 = vunpack.c.l.b16 %v311
        %v832 = vunpack.c.h.b16 %v311
        %v833 = vunpack.c.l.b16 %v312
        %v834 = vunpack.c.h.b16 %v312
        %v835 = vunpack.c.l.b16 %v313
        %v836 = vunpack.c.h.b16 %v313
        %v837 = vunpack.c.l.b16 %v314
        %v838 = vunpack.c.h.b16 %v314
        %v839 = vunpack.c.l.b16 %v315
        %v840 = vunpack.c.h.b16 %v315
        %v841 = vunpack.c.l.b16 %v316
        %v842 = vunpack.c.h.b16 %v316
        %v843 = vunpack.c.l.b16 %v317
        %v844 = vunpack.c.h.b16 %v317
        %v845 = vunpack.c.l.b16 %v318
        %v846 = vunpack.c.h.b16 %v318
        %v847 = vunpack.c.l.b16 %v319
        %v848 = vunpack.c.h.b16 %v319
        %v849 = vunpack.c.l.b16 %v320
        %v850 = vunpack.c.h.b16 %v320
        %v851 = vunpack.c.l.b16 %v321
        %v852 = vunpack.c.h.b16 %v321
        %v853 = vunpack.c.l.b16 %v322
        %v854 = vunpack.c.h.b16 %v322
        %v855 = vunpack.c.l.b16 %v323
        %v856 = vunpack.c.h.b16 %v323
        %v857 = vunpack.c.l.b16 %v324
        %v858 = vunpack.c.h.b16 %v324
        %v859 = vunpack.c.l.b16 %v325
        %v860 = vunpack.c.h.b16 %v325
        %v861 = vunpack.c.l.b16 %v326
        %v862 = vunpack.c.h.b16 %v326
        %v863 = vunpack.c.l.b16 %v327
        %v864 = vunpack.c.h.b16 %v327
        %v865 = vunpack.c.l.b16 %v328
        %v866 = vunpack.c.h.b16 %v328
        %v867 = vunpack.c.l.b16 %v329
        %v868 = vunpack.c.h.b16 %v329
        %v869 = vunpack.c.l.b16 %v330
        %v870 = vunpack.c.h.b16 %v330
        %v871 = vunpack.c.l.b16 %v331
        %v872 = vunpack.c.h.b16 %v331
        %v873 = vunpack.c.l.b16 %v332
        %v874 = vunpack.c.h.b16 %v332
        %v875 = vunpack.c.l.b16 %v333
        %v876 = vunpack.c.h.b16 %v333
        %v877 = vunpack.c.l.b16 %v334
        %v878 = vunpack.c.h.b16 %v334
        %v879 = vunpack.c.l.b16 %v335
        %v880 = vunpack.c.h.b16 %v335
        %v881 = vunpack.c.l.b16 %v336
        %v882 = vunpack.c.h.b16 %v336
        %v883 = vunpack.c.l.b16 %v337
        %v884 = vunpack.c.h.b16 %v337
        %v885 = vunpack.c.l.b16 %v338
        %v886 = vunpack.c.h.b16 %v338
        %v887 = vunpack.c.l.b16 %v339
        %v888 = vunpack.c.h.b16 %v339
        %v889 = vunpack.c.l.b16 %v340
        %v890 = vunpack.c.h.b16 %v340
        %v891 = vunpack.c.l.b16 %v341
        %v892 = vunpack.c.h.b16 %v341
        %v893 = vunpack.c.l.b16 %v342
        %v894 = vunpack.c.h.b16 %v342
        %v895 = vunpack.c.l.b16 %v343
        %v896 = vunpack.c.h.b16 %v343
        %v897 = vunpack.c.l.b16 %v344
        %v898 = vunpack.c.h.b16 %v344
        %v899 = vunpack.c.l.b16 %v345
        %v900 = vunpack.c.h.b16 %v345
        %v901 = vunpack.c.l.b16 %v346
        %v902 = vunpack.c.h.b16 %v346
        %v903 = vunpack.c.l.b16 %v347
        %v904 = vunpack.c.h.b16 %v347
        %v905 = vunpack.c.l.b16 %v348
        %v906 = vunpack.c.h.b16 %v348
        %v907 = vunpack.c.l.b16 %v349
        %v908 = vunpack.c.h.b16 %v349
        %v909 = vunpack.c.l.b16 %v350
        %v910 = vunpack.c.h.b16 %v350
        %v911 = vunpack.c.l.b16 %v351
        %v912 = vunpack.c.h.b16 %v351
        %v913 = vunpack.c.l.b16 %v352
        %v914 = vunpack.c.h.b16 %v352
        %v915 = vunpack.c.l.b16 %v353
        %v916 = vunpack.c.h.b16 %v353
        %v917 = vunpack.c.l.b16 %v354
        %v918 = vunpack.c.h.b16 %v354
        %v919 = vunpack.c.l.b16 %v355
        %v920 = vunpack.c.h.b16 %v355
        %v921 = vunpack.c.l.b16 %v356
        %v922 = vunpack.c.h.b16 %v356
        %v923 = vunpack.c.l.b16 %v357
        %v924 = vunpack.c.h.b16 %v357
        %v925 = vunpack.c.l.b16 %v358
        %v926 = vunpack.c.h.b16 %v358
        %v927 = vunpack.c.l.b16 %v359
        %v928 = vunpack.c.h.b16 %v359
        %v929 = vunpack.c.l.b16 %v360
        %v930 = vunpack.c.h.b16 %v360
        %v931 = vunpack.c.l.b16 %v361
        %v932 = vunpack.c.h.b16 %v361
        %v933 = vunpack.c.l.b16 %v362
        %v934 = vunpack.c.h.b16 %v362
        %v935 = vunpack.c.l.b16 %v363
        %v936 = vunpack.c.h.b16 %v363
        %v937 = vunpack.c.l.b16 %v364
        %v938 = vunpack.c.h.b16 %v364
        %v939 = vunpack.c.l.b16 %v365
        %v940 = vunpack.c.h.b16 %v365
        %v941 = vunpack.c.l.b16 %v366
        %v942 = vunpack.c.h.b16 %v366
        %v943 = vunpack.c.l.b16 %v367
        %v944 = vunpack.c.h.b16 %v367
        %v945 = vunpack.c.l.b16 %v368
        %v946 = vunpack.c.h.b16 %v368
        %v947 = vunpack.c.l.b16 %v369
        %v948 = vunpack.c.h.b16 %v369
        %v949 = vunpack.c.l.b16 %v370
        %v950 = vunpack.c.h.b16 %v370
        %v951 = vunpack.c.l.b16 %v371
        %v952 = vunpack.c.h.b16 %v371
        %v953 = vunpack.c.l.b16 %v372
        %v954 = vunpack.c.h.b16 %v372
        %v955 = vunpack.c.l.b16 %v373
        %v956 = vunpack.c.h.b16 %v373
        %v957 = vunpack.c.l.b16 %v374
        %v958 = vunpack.c.h.b16 %v374
        %v959 = vunpack.c.l.b16 %v375
        %v960 = vunpack.c.h.b16 %v375
        %v961 = vunpack.c.l.b16 %v376
        %v962 = vunpack.c.h.b16 %v376
        %v963 = vunpack.c.l.b16 %v377
        %v964 = vunpack.c.h.b16 %v377
        %v965 = vunpack.c.l.b16 %v378
        %v966 = vunpack.c.h.b16 %v378
        %v967 = vunpack.c.l.b16 %v379
        %v968 = vunpack.c.h.b16 %v379
        %v969 = vunpack.c.l.b16 %v380
        %v970 = vunpack.c.h.b16 %v380
        %v971 = vunpack.c.l.b16 %v381
        %v972 = vunpack.c.h.b16 %v381
        %v973 = vunpack.c.l.b16 %v382
        %v974 = vunpack.c.h.b16 %v382
        %v975 = vunpack.c.l.b16 %v383
        %v976 = vunpack.c.h.b16 %v383
        %v977 = vunpack.c.l.b16 %v384
        %v978 = vunpack.c.h.b16 %v384
        %v979 = vunpack.c.l.b16 %v385
        %v980 = vunpack.c.h.b16 %v385
        %v981 = vunpack.c.l.b16 %v386
        %v982 = vunpack.c.h.b16 %v386
        %v983 = vunpack.c.l.b16 %v387
        %v984 = vunpack.c.h.b16 %v387
        %v985 = vunpack.c.l.b16 %v388
        %v986 = vunpack.c.h.b16 %v388
        %v987 = vunpack.c.l.b16 %v389
        %v988 = vunpack.c.h.b16 %v389
        %v989 = vunpack.c.l.b16 %v390
        %v990 = vunpack.c.h.b16 %v390
        %v991 = vunpack.c.l.b16 %v391
        %v992 = vunpack.c.h.b16 %v391
        %v993 = vunpack.c.l.b16 %v392
        %v994 = vunpack.c.h.b16 %v392
        %v995 = vunpack.c.l.b16 %v393
        %v996 = vunpack.c.h.b16 %v393
        %v997 = vunpack.c.l.b16 %v394
        %v998 = vunpack.c.h.b16 %v394
        %v999 = vunpack.c.l.b16 %v395
        %v1000 = vunpack.c.h.b16 %v395
        %v1001 = vunpack.c.l.b16 %v396
        %v1002 = vunpack.c.h.b16 %v396
        %v1003 = vunpack.c.l.b16 %v397
        %v1004 = vunpack.c.h.b16 %v397
        %v1005 = vunpack.c.l.b16 %v398
        %v1006 = vunpack.c.h.b16 %v398
        %v1007 = vunpack.c.l.b16 %v399
        %v1008 = vunpack.c.h.b16 %v399
        %v1009 = vunpack.c.l.b16 %v400
        %v1010 = vunpack.c.h.b16 %v400
        %v1011 = vunpack.c.l.b16 %v401
        %v1012 = vunpack.c.h.b16 %v401
        %v1013 = vunpack.c.l.b16 %v402
        %v1014 = vunpack.c.h.b16 %v402
        %v1015 = vunpack.c.l.b16 %v403
        %v1016 = vunpack.c.h.b16 %v403
        %v1017 = vunpack.c.l.b16 %v404
        %v1018 = vunpack.c.h.b16 %v404
        %v1019 = vunpack.c.l.b16 %v405
        %v1020 = vunpack.c.h.b16 %v405
        %v1021 = vunpack.c.l.b16 %v406
        %v1022 = vunpack.c.h.b16 %v406
        %v1023 = vunpack.c.l.b16 %v407
        %v1024 = vunpack.c.h.b16 %v407
        %v1025 = vunpack.c.l.b16 %v408
        %v1026 = vunpack.c.h.b16 %v408
        %v1027 = vunpack.c.l.b16 %v409
        %v1028 = vunpack.c.h.b16 %v409
        %v1029 = vunpack.c.l.b16 %v410
        %v1030 = vunpack.c.h.b16 %v410
        %v1031 = vunpack.c.l.b16 %v411
        %v1032 = vunpack.c.h.b16 %v411
        %v1033 = vunpack.c.l.b16 %v412
        %v1034 = vunpack.c.h.b16 %v412
        %v1035 = vunpack.c.l.b16 %v413
        %v1036 = vunpack.c.h.b16 %v413
        %v1037 = vunpack.c.l.b16 %v414
        %v1038 = vunpack.c.h.b16 %v414
        %v1039 = vunpack.c.l.b16 %v415
        %v1040 = vunpack.c.h.b16 %v415
        %v1041 = vunpack.c.l.b16 %v416
        %v1042 = vunpack.c.h.b16 %v416
        %v1043 = vunpack.c.l.b16 %v417
        %v1044 = vunpack.c.h.b16 %v417
        %v1045 = vunpack.c.l.b16 %v418
        %v1046 = vunpack.c.h.b16 %v418
        %v1047 = vunpack.c.l.b16 %v419
        %v1048 = vunpack.c.h.b16 %v419
        %v1049 = vunpack.c.l.b16 %v420
        %v1050 = vunpack.c.h.b16 %v420
        %v1051 = vunpack.c.l.b16 %v421
        %v1052 = vunpack.c.h.b16 %v421
        %v1053 = vunpack.c.l.b16 %v422
        %v1054 = vunpack.c.h.b16 %v422
        %v1055 = vunpack.c.l.b16 %v423
        %v1056 = vunpack.c.h.b16 %v423
        %v1057 = vunpack.c.l.b16 %v424
        %v1058 = vunpack.c.h.b16 %v424
        %v1059 = vunpack.c.l.b16 %v425
        %v1060 = vunpack.c.h.b16 %v425
        %v1061 = vunpack.c.l.b16 %v426
        %v1062 = vunpack.c.h.b16 %v426
        %v1063 = vunpack.c.l.b16 %v427
        %v1064 = vunpack.c.h.b16 %v427
        %v1065 = vunpack.c.l.b16 %v428
        %v1066 = vunpack.c.h.b16 %v428
        %v1067 = vunpack.c.l.b16 %v429
        %v1068 = vunpack.c.h.b16 %v429
        %v1069 = vunpack.c.l.b16 %v430
        %v1070 = vunpack.c.h.b16 %v430
        %v1071 = vunpack.c.l.b16 %v431
        %v1072 = vunpack.c.h.b16 %v431
        %v1073 = vunpack.c.l.b16 %v432
        %v1074 = vunpack.c.h.b16 %v432
        %v1075 = vunpack.c.l.b16 %v433
        %v1076 = vunpack.c.h.b16 %v433
        %v1077 = vunpack.c.l.b16 %v434
        %v1078 = vunpack.c.h.b16 %v434
        %v1079 = vunpack.c.l.b16 %v435
        %v1080 = vunpack.c.h.b16 %v435
        %v1081 = vunpack.c.l.b16 %v436
        %v1082 = vunpack.c.h.b16 %v436
        %v1083 = vunpack.c.l.b16 %v437
        %v1084 = vunpack.c.h.b16 %v437
        %v1085 = vunpack.c.l.b16 %v438
        %v1086 = vunpack.c.h.b16 %v438
        %v1087 = vunpack.c.l.b16 %v439
        %v1088 = vunpack.c.h.b16 %v439
        %v1089 = vunpack.c.l.b16 %v440
        %v1090 = vunpack.c.h.b16 %v440
        %v1091 = vunpack.c.l.b16 %v441
        %v1092 = vunpack.c.h.b16 %v441
        %v1093 = vunpack.c.l.b16 %v442
        %v1094 = vunpack.c.h.b16 %v442
        %v1095 = vunpack.c.l.b16 %v443
        %v1096 = vunpack.c.h.b16 %v443
        %v1097 = vunpack.c.l.b16 %v444
        %v1098 = vunpack.c.h.b16 %v444
        %v1099 = vunpack.c.l.b16 %v445
        %v1100 = vunpack.c.h.b16 %v445
        %v1101 = vunpack.c.l.b16 %v446
        %v1102 = vunpack.c.h.b16 %v446
        %v1103 = vunpack.c.l.b16 %v447
        %v1104 = vunpack.c.h.b16 %v447
        %v1105 = vunpack.c.l.b16 %v448
        %v1106 = vunpack.c.h.b16 %v448
        %v1107 = vunpack.c.l.b16 %v449
        %v1108 = vunpack.c.h.b16 %v449
        %v1109 = vunpack.c.l.b16 %v450
        %v1110 = vunpack.c.h.b16 %v450
        %v1111 = vunpack.c.l.b16 %v451
        %v1112 = vunpack.c.h.b16 %v451
        %v1113 = vunpack.c.l.b16 %v452
        %v1114 = vunpack.c.h.b16 %v452
        %v1115 = vunpack.c.l.b16 %v453
        %v1116 = vunpack.c.h.b16 %v453
        %v1117 = vunpack.c.l.b16 %v454
        %v1118 = vunpack.c.h.b16 %v454
        %v1119 = vunpack.c.l.b16 %v455
        %v1120 = vunpack.c.h.b16 %v455
        %v1121 = vunpack.c.l.b16 %v456
        %v1122 = vunpack.c.h.b16 %v456
        %v1123 = vunpack.c.l.b16 %v457
        %v1124 = vunpack.c.h.b16 %v457
        %v1125 = vunpack.c.l.b16 %v458
        %v1126 = vunpack.c.h.b16 %v458
        %v1127 = vunpack.c.l.b16 %v459
        %v1128 = vunpack.c.h.b16 %v459
        %v1129 = vunpack.c.l.b16 %v460
        %v1130 = vunpack.c.h.b16 %v460
        %v1131 = vunpack.c.l.b16 %v461
        %v1132 = vunpack.c.h.b16 %v461
        %v1133 = vunpack.c.l.b16 %v462
        %v1134 = vunpack.c.h.b16 %v462
        %v1135 = vunpack.c.l.b16 %v463
        %v1136 = vunpack.c.h.b16 %v463
        %v1137 = vunpack.c.l.b16 %v464
        %v1138 = vunpack.c.h.b16 %v464
        %v1139 = vunpack.c.l.b16 %v465
        %v1140 = vunpack.c.h.b16 %v465
        %v1141 = vunpack.c.l.b16 %v466
        %v1142 = vunpack.c.h.b16 %v466
        %v1143 = vunpack.c.l.b16 %v467
        %v1144 = vunpack.c.h.b16 %v467
        %v1145 = vunpack.c.l.b16 %v468
        %v1146 = vunpack.c.h.b16 %v468
        %v1147 = vunpack.c.l.b16 %v469
        %v1148 = vunpack.c.h.b16 %v469
        %v1149 = vunpack.c.l.b16 %v470
        %v1150 = vunpack.c.h.b16 %v470
        %v1151 = vunpack.c.l.b16 %v471
        %v1152 = vunpack.c.h.b16 %v471
        %v1153 = vunpack.c.l.b16 %v472
        %v1154 = vunpack.c.h.b16 %v472
        %v1155 = vunpack.c.l.b16 %v473
        %v1156 = vunpack.c.h.b16 %v473
        %v1157 = vunpack.c.l.b16 %v474
        %v1158 = vunpack.c.h.b16 %v474
        %v1159 = vunpack.c.l.b16 %v475
        %v1160 = vunpack.c.h.b16 %v475
        %v1161 = vunpack.c.l.b16 %v476
        %v1162 = vunpack.c.h.b16 %v476
        %v1163 = vunpack.c.l.b16 %v477
        %v1164 = vunpack.c.h.b16 %v477
        %v1165 = vunpack.c.l.b16 %v478
        %v1166 = vunpack.c.h.b16 %v478
        %v1167 = vunpack.c.l.b16 %v479
        %v1168 = vunpack.c.h.b16 %v479
        %v1169 = vunpack.c.l.b16 %v480
        %v1170 = vunpack.c.h.b16 %v480
        %v1171 = vunpack.c.l.b16 %v481
        %v1172 = vunpack.c.h.b16 %v481
        %v1173 = vunpack.c.l.b16 %v482
        %v1174 = vunpack.c.h.b16 %v482
        %v1175 = vunpack.c.l.b16 %v483
        %v1176 = vunpack.c.h.b16 %v483
        %v1177 = vunpack.c.l.b16 %v484
        %v1178 = vunpack.c.h.b16 %v484
        %v1179 = vunpack.c.l.b16 %v485
        %v1180 = vunpack.c.h.b16 %v485
        %v1181 = vunpack.c.l.b16 %v486
        %v1182 = vunpack.c.h.b16 %v486
        %v1183 = vunpack.c.l.b16 %v487
        %v1184 = vunpack.c.h.b16 %v487
        %v1185 = vunpack.c.l.b16 %v488
        %v1186 = vunpack.c.h.b16 %v488
        %v1187 = vunpack.c.l.b16 %v489
        %v1188 = vunpack.c.h.b16 %v489
        %v1189 = vunpack.c.l.b16 %v490
        %v1190 = vunpack.c.h.b16 %v490
        %v1191 = vunpack.c.l.b16 %v491
        %v1192 = vunpack.c.h.b16 %v491
        %v1193 = vunpack.c.l.b16 %v492
        %v1194 = vunpack.c.h.b16 %v492
        %v1195 = vunpack.c.l.b16 %v493
        %v1196 = vunpack.c.h.b16 %v493
        %v1197 = vunpack.c.l.b16 %v494
        %v1198 = vunpack.c.h.b16 %v494
        %v1199 = vunpack.c.l.b16 %v495
        %v1200 = vunpack.c.h.b16 %v495
        %v1201 = vunpack.c.l.b16 %v496
        %v1202 = vunpack.c.h.b16 %v496
        %v1203 = vunpack.c.l.b16 %v497
        %v1204 = vunpack.c.h.b16 %v497
        %v1205 = vunpack.c.l.b16 %v498
        %v1206 = vunpack.c.h.b16 %v498
        %v1207 = vunpack.c.l.b16 %v499
        %v1208 = vunpack.c.h.b16 %v499
        %v1209 = vunpack.c.l.b16 %v500
        %v1210 = vunpack.c.h.b16 %v500
        %v1211 = vunpack.c.l.b16 %v501
        %v1212 = vunpack.c.h.b16 %v501
        %v1213 = vunpack.c.l.b16 %v502
        %v1214 = vunpack.c.h.b16 %v502
        %v1215 = vunpack.c.l.b16 %v503
        %v1216 = vunpack.c.h.b16 %v503
        %v1217 = vunpack.c.l.b16 %v504
        %v1218 = vunpack.c.h.b16 %v504
        %v1219 = vunpack.c.l.b16 %v505
        %v1220 = vunpack.c.h.b16 %v505
        %v1221 = vunpack.c.l.b16 %v506
        %v1222 = vunpack.c.h.b16 %v506
        %v1223 = vunpack.c.l.b16 %v507
        %v1224 = vunpack.c.h.b16 %v507
        %v1225 = vunpack.c.l.b16 %v508
        %v1226 = vunpack.c.h.b16 %v508
        %v1227 = vunpack.c.l.b16 %v509
        %v1228 = vunpack.c.h.b16 %v509
        %v1229 = vunpack.c.l.b16 %v510
        %v1230 = vunpack.c.h.b16 %v510
        %v1231 = vunpack.c.l.b16 %v511
        %v1232 = vunpack.c.h.b16 %v511
        %v1233 = vunpack.c.l.b16 %v512
        %v1234 = vunpack.c.h.b16 %v512
        %v1235 = vunpack.c.l.b16 %v513
        %v1236 = vunpack.c.h.b16 %v513
        %v1237 = vunpack.c.l.b16 %v514
        %v1238 = vunpack.c.h.b16 %v514
        %v1239 = vunpack.c.l.b16 %v515
        %v1240 = vunpack.c.h.b16 %v515
        %v1241 = vunpack.c.l.b16 %v516
        %v1242 = vunpack.c.h.b16 %v516
        %v1243 = vunpack.c.l.b16 %v517
        %v1244 = vunpack.c.h.b16 %v517
        %v1245 = vunpack.c.l.b16 %v518
        %v1246 = vunpack.c.h.b16 %v518
        %v1247 = vunpack.c.l.b16 %v519
        %v1248 = vunpack.c.h.b16 %v519
        %v1249 = vunpack.c.l.b16 %v520
        %v1250 = vunpack.c.h.b16 %v520
        %v1251 = vunpack.c.l.b16 %v521
        %v1252 = vunpack.c.h.b16 %v521
        %v1253 = vunpack.c.l.b16 %v522
        %v1254 = vunpack.c.h.b16 %v522
        %v1255 = vunpack.c.l.b16 %v523
        %v1256 = vunpack.c.h.b16 %v523
        %v1257 = vunpack.c.l.b16 %v524
        %v1258 = vunpack.c.h.b16 %v524
        %v1259 = vunpack.c.l.b16 %v525
        %v1260 = vunpack.c.h.b16 %v525
        %v1261 = vunpack.c.l.b16 %v526
        %v1262 = vunpack.c.h.b16 %v526
        %v1263 = vunpack.c.l.b16 %v527
        %v1264 = vunpack.c.h.b16 %v527
        %v1265 = vunpack.c.l.b16 %v528
        %v1266 = vunpack.c.h.b16 %v528
        %v1267 = vunpack.c.l.b16 %v529
        %v1268 = vunpack.c.h.b16 %v529
        %v1269 = vunpack.c.l.b16 %v530
        %v1270 = vunpack.c.h.b16 %v530
        %v1271 = vunpack.c.l.b16 %v531
        %v1272 = vunpack.c.h.b16 %v531
        %v1273 = vunpack.c.l.b16 %v532
        %v1274 = vunpack.c.h.b16 %v532
        %v1275 = vunpack.c.l.b16 %v533
        %v1276 = vunpack.c.h.b16 %v533
        %v1277 = vunpack.c.l.b16 %v534
        %v1278 = vunpack.c.h.b16 %v534
        %v1279 = vunpack.c.l.b16 %v535
        %v1280 = vunpack.c.h.b16 %v535
        %v1281 = vunpack.c.l.b16 %v536
        %v1282 = vunpack.c.h.b16 %v536
        %v1283 = vunpack.c.l.b16 %v537
        %v1284 = vunpack.c.h.b16 %v537
        %v1285 = vunpack.c.l.b16 %v538
        %v1286 = vunpack.c.h.b16 %v538
        %v1287 = vunpack.c.l.b16 %v539
        %v1288 = vunpack.c.h.b16 %v539
        %v1289 = vunpack.c.l.b16 %v540
        %v1290 = vunpack.c.h.b16 %v540
        %v1291 = vunpack.c.l.b16 %v541
        %v1292 = vunpack.c.h.b16 %v541
        %v1293 = vunpack.c.l.b16 %v542
        %v1294 = vunpack.c.h.b16 %v542
        %v1295 = vunpack.c.l.b16 %v543
        %v1296 = vunpack.c.h.b16 %v543
        %v1297 = vunpack.c.l.b16 %v544
        %v1298 = vunpack.c.h.b16 %v544
        %v1299 = vunpack.c.l.b16 %v545
        %v1300 = vunpack.c.h.b16 %v545
        %v1301 = vunpack.c.l.b16 %v546
        %v1302 = vunpack.c.h.b16 %v546
        %v1303 = vunpack.c.l.b16 %v547
        %v1304 = vunpack.c.h.b16 %v547
        %v1305 = vunpack.c.l.b16 %v548
        %v1306 = vunpack.c.h.b16 %v548
        %v1307 = vunpack.c.l.b16 %v549
        %v1308 = vunpack.c.h.b16 %v549
        %v1309 = vunpack.c.l.b16 %v550
        %v1310 = vunpack.c.h.b16 %v550
        %v1311 = vunpack.c.l.b16 %v551
        %v1312 = vunpack.c.h.b16 %v551
        %v1313 = vunpack.c.l.b16 %v552
        %v1314 = vunpack.c.h.b16 %v552
        %v1315 = vunpack.c.l.b16 %v553
        %v1316 = vunpack.c.h.b16 %v553
        %v1317 = vunpack.c.l.b16 %v554
        %v1318 = vunpack.c.h.b16 %v554
        %v1319 = vunpack.c.l.b16 %v555
        %v1320 = vunpack.c.h.b16 %v555
        %v1321 = vunpack.c.l.b16 %v556
        %v1322 = vunpack.c.h.b16 %v556
        %v1323 = vunpack.c.l.b16 %v557
        %v1324 = vunpack.c.h.b16 %v557
        %v1325 = vunpack.c.l.b16 %v558
        %v1326 = vunpack.c.h.b16 %v558
        %v1327 = vpack.c.b16 %v819, %v815
        %v1328 = vpack.c.b16 %v820, %v816
        %v1329 = vpack.c.b16 %v821, %v817
        %v1330 = vpack.c.b16 %v822, %v818
        %v1331 = vpack.c.b16 %v827, %v823
        %v1332 = vpack.c.b16 %v828, %v824
        %v1333 = vpack.c.b16 %v829, %v825
        %v1334 = vpack.c.b16 %v830, %v826
        %v1335 = vpack.c.b16 %v835, %v831
        %v1336 = vpack.c.b16 %v836, %v832
        %v1337 = vpack.c.b16 %v837, %v833
        %v1338 = vpack.c.b16 %v838, %v834
        %v1339 = vpack.c.b16 %v843, %v839
        %v1340 = vpack.c.b16 %v844, %v840
        %v1341 = vpack.c.b16 %v845, %v841
        %v1342 = vpack.c.b16 %v846, %v842
        %v1343 = vpack.c.b16 %v851, %v847
        %v1344 = vpack.c.b16 %v852, %v848
        %v1345 = vpack.c.b16 %v853, %v849
        %v1346 = vpack.c.b16 %v854, %v850
        %v1347 = vpack.c.b16 %v859, %v855
        %v1348 = vpack.c.b16 %v860, %v856
        %v1349 = vpack.c.b16 %v861, %v857
        %v1350 = vpack.c.b16 %v862, %v858
        %v1351 = vpack.c.b16 %v867, %v863
        %v1352 = vpack.c.b16 %v868, %v864
        %v1353 = vpack.c.b16 %v869, %v865
        %v1354 = vpack.c.b16 %v870, %v866
        %v1355 = vpack.c.b16 %v875, %v871
        %v1356 = vpack.c.b16 %v876, %v872
        %v1357 = vpack.c.b16 %v877, %v873
        %v1358 = vpack.c.b16 %v878, %v874
        %v1359 = vpack.c.b16 %v883, %v879
        %v1360 = vpack.c.b16 %v884, %v880
        %v1361 = vpack.c.b16 %v885, %v881
        %v1362 = vpack.c.b16 %v886, %v882
        %v1363 = vpack.c.b16 %v891, %v887
        %v1364 = vpack.c.b16 %v892, %v888
        %v1365 = vpack.c.b16 %v893, %v889
        %v1366 = vpack.c.b16 %v894, %v890
        %v1367 = vpack.c.b16 %v899, %v895
        %v1368 = vpack.c.b16 %v900, %v896
        %v1369 = vpack.c.b16 %v901, %v897
        %v1370 = vpack.c.b16 %v902, %v898
        %v1371 = vpack.c.b16 %v907, %v903
        %v1372 = vpack.c.b16 %v908, %v904
        %v1373 = vpack.c.b16 %v909, %v905
        %v1374 = vpack.c.b16 %v910, %v906
        %v1375 = vpack.c.b16 %v915, %v911
        %v1376 = vpack.c.b16 %v916, %v912
        %v1377 = vpack.c.b16 %v917, %v913
        %v1378 = vpack.c.b16 %v918, %v914
        %v1379 = vpack.c.b16 %v923, %v919
        %v1380 = vpack.c.b16 %v924, %v920
        %v1381 = vpack.c.b16 %v925, %v921
        %v1382 = vpack.c.b16 %v926, %v922
        %v1383 = vpack.c.b16 %v931, %v927
        %v1384 = vpack.c.b16 %v932, %v928
        %v1385 = vpack.c.b16 %v933, %v929
        %v1386 = vpack.c.b16 %v934, %v930
        %v1387 = vpack.c.b16 %v939, %v935
        %v1388 = vpack.c.b16 %v940, %v936
        %v1389 = vpack.c.b16 %v941, %v937
        %v1390 = vpack.c.b16 %v942, %v938
        %v1391 = vpack.c.b16 %v947, %v943
        %v1392 = vpack.c.b16 %v948, %v944
        %v1393 = vpack.c.b16 %v949, %v945
        %v1394 = vpack.c.b16 %v950, %v946
        %v1395 = vpack.c.b16 %v955, %v951
        %v1396 = vpack.c.b16 %v956, %v952
        %v1397 = vpack.c.b16 %v957, %v953
        %v1398 = vpack.c.b16 %v958, %v954
        %v1399 = vpack.c.b16 %v963, %v959
        %v1400 = vpack.c.b16 %v964, %v960
        %v1401 = vpack.c.b16 %v965, %v961
        %v1402 = vpack.c.b16 %v966, %v962
        %v1403 = vpack.c.b16 %v971, %v967
        %v1404 = vpack.c.b16 %v972, %v968
        %v1405 = vpack.c.b16 %v973, %v969
        %v1406 = vpack.c.b16 %v974, %v970
        %v1407 = vpack.c.b16 %v979, %v975
        %v1408 = vpack.c.b16 %v980, %v976
        %v1409 = vpack.c.b16 %v981, %v977
        %v1410 = vpack.c.b16 %v982, %v978
        %v1411 = vpack.c.b16 %v987, %v983
        %v1412 = vpack.c.b16 %v988, %v984
        %v1413 = vpack.c.b16 %v989, %v985
        %v1414 = vpack.c.b16 %v990, %v986
        %v1415 = vpack.c.b16 %v995, %v991
        %v1416 = vpack.c.b16 %v996, %v992
        %v1417 = vpack.c.b16 %v997, %v993
        %v1418 = vpack.c.b16 %v998, %v994
        %v1419 = vpack.c.b16 %v1003, %v999
        %v1420 = vpack.c.b16 %v1004, %v1000
        %v1421 = vpack.c.b16 %v1005, %v1001
        %v1422 = vpack.c.b16 %v1006, %v1002
        %v1423 = vpack.c.b16 %v1011, %v1007
        %v1424 = vpack.c.b16 %v1012, %v1008
        %v1425 = vpack.c.b16 %v1013, %v1009
        %v1426 = vpack.c.b16 %v1014, %v1010
        %v1427 = vpack.c.b16 %v1019, %v1015
        %v1428 = vpack.c.b16 %v1020, %v1016
        %v1429 = vpack.c.b16 %v1021, %v1017
        %v1430 = vpack.c.b16 %v1022, %v1018
        %v1431 = vpack.c.b16 %v1027, %v1023
        %v1432 = vpack.c.b16 %v1028, %v1024
        %v1433 = vpack.c.b16 %v1029, %v1025
        %v1434 = vpack.c.b16 %v1030, %v1026
        %v1435 = vpack.c.b16 %v1035, %v1031
        %v1436 = vpack.c.b16 %v1036, %v1032
        %v1437 = vpack.c.b16 %v1037, %v1033
        %v1438 = vpack.c.b16 %v1038, %v1034
        %v1439 = vpack.c.b16 %v1043, %v1039
        %v1440 = vpack.c.b16 %v1044, %v1040
        %v1441 = vpack.c.b16 %v1045, %v1041
        %v1442 = vpack.c.b16 %v1046, %v1042
        %v1443 = vpack.c.b16 %v1051, %v1047
        %v1444 = vpack.c.b16 %v1052, %v1048
        %v1445 = vpack.c.b16 %v1053, %v1049
        %v1446 = vpack.c.b16 %v1054, %v1050
        %v1447 = vpack.c.b16 %v1059, %v1055
        %v1448 = vpack.c.b16 %v1060, %v1056
        %v1449 = vpack.c.b16 %v1061, %v1057
        %v1450 = vpack.c.b16 %v1062, %v1058
        %v1451 = vpack.c.b16 %v1067, %v1063
        %v1452 = vpack.c.b16 %v1068, %v1064
        %v1453 = vpack.c.b16 %v1069, %v1065
        %v1454 = vpack.c.b16 %v1070, %v1066
        %v1455 = vpack.c.b16 %v1075, %v1071
        %v1456 = vpack.c.b16 %v1076, %v1072
        %v1457 = vpack.c.b16 %v1077, %v1073
        %v1458 = vpack.c.b16 %v1078, %v1074
        %v1459 = vpack.c.b16 %v1083, %v1079
        %v1460 = vpack.c.b16 %v1084, %v1080
        %v1461 = vpack.c.b16 %v1085, %v1081
        %v1462 = vpack.c.b16 %v1086, %v1082
        %v1463 = vpack.c.b16 %v1091, %v1087
        %v1464 = vpack.c.b16 %v1092, %v1088
        %v1465 = vpack.c.b16 %v1093, %v1089
        %v1466 = vpack.c.b16 %v1094, %v1090
        %v1467 = vpack.c.b16 %v1099, %v1095
        %v1468 = vpack.c.b16 %v1100, %v1096
        %v1469 = vpack.c.b16 %v1101, %v1097
        %v1470 = vpack.c.b16 %v1102, %v1098
        %v1471 = vpack.c.b16 %v1107, %v1103
        %v1472 = vpack.c.b16 %v1108, %v1104
        %v1473 = vpack.c.b16 %v1109, %v1105
        %v1474 = vpack.c.b16 %v1110, %v1106
        %v1475 = vpack.c.b16 %v1115, %v1111
        %v1476 = vpack.c.b16 %v1116, %v1112
        %v1477 = vpack.c.b16 %v1117, %v1113
        %v1478 = vpack.c.b16 %v1118, %v1114
        %v1479 = vpack.c.b16 %v1123, %v1119
        %v1480 = vpack.c.b16 %v1124, %v1120
        %v1481 = vpack.c.b16 %v1125, %v1121
        %v1482 = vpack.c.b16 %v1126, %v1122
        %v1483 = vpack.c.b16 %v1131, %v1127
        %v1484 = vpack.c.b16 %v1132, %v1128
        %v1485 = vpack.c.b16 %v1133, %v1129
        %v1486 = vpack.c.b16 %v1134, %v1130
        %v1487 = vpack.c.b16 %v1139, %v1135
        %v1488 = vpack.c.b16 %v1140, %v1136
        %v1489 = vpack.c.b16 %v1141, %v1137
        %v1490 = vpack.c.b16 %v1142, %v1138
        %v1491 = vpack.c.b16 %v1147, %v1143
        %v1492 = vpack.c.b16 %v1148, %v1144
        %v1493 = vpack.c.b16 %v1149, %v1145
        %v1494 = vpack.c.b16 %v1150, %v1146
        %v1495 = vpack.c.b16 %v1155, %v1151
        %v1496 = vpack.c.b16 %v1156, %v1152
        %v1497 = vpack.c.b16 %v1157, %v1153
        %v1498 = vpack.c.b16 %v1158, %v1154
        %v1499 = vpack.c.b16 %v1163, %v1159
        %v1500 = vpack.c.b16 %v1164, %v1160
        %v1501 = vpack.c.b16 %v1165, %v1161
        %v1502 = vpack.c.b16 %v1166, %v1162
        %v1503 = vpack.c.b16 %v1171, %v1167
        %v1504 = vpack.c.b16 %v1172, %v1168
        %v1505 = vpack.c.b16 %v1173, %v1169
        %v1506 = vpack.c.b16 %v1174, %v1170
        %v1507 = vpack.c.b16 %v1179, %v1175
        %v1508 = vpack.c.b16 %v1180, %v1176
        %v1509 = vpack.c.b16 %v1181, %v1177
        %v1510 = vpack.c.b16 %v1182, %v1178
        %v1511 = vpack.c.b16 %v1187, %v1183
        %v1512 = vpack.c.b16 %v1188, %v1184
        %v1513 = vpack.c.b16 %v1189, %v1185
        %v1514 = vpack.c.b16 %v1190, %v1186
        %v1515 = vpack.c.b16 %v1195, %v1191
        %v1516 = vpack.c.b16 %v1196, %v1192
        %v1517 = vpack.c.b16 %v1197, %v1193
        %v1518 = vpack.c.b16 %v1198, %v1194
        %v1519 = vpack.c.b16 %v1203, %v1199
        %v1520 = vpack.c.b16 %v1204, %v1200
        %v1521 = vpack.c.b16 %v1205, %v1201
        %v1522 = vpack.c.b16 %v1206, %v1202
        %v1523 = vpack.c.b16 %v1211, %v1207
        %v1524 = vpack.c.b16 %v1212, %v1208
        %v1525 = vpack.c.b16 %v1213, %v1209
        %v1526 = vpack.c.b16 %v1214, %v1210
        %v1527 = vpack.c.b16 %v1219, %v1215
        %v1528 = vpack.c.b16 %v1220, %v1216
        %v1529 = vpack.c.b16 %v1221, %v1217
        %v1530 = vpack.c.b16 %v1222, %v1218
        %v1531 = vpack.c.b16 %v1227, %v1223
        %v1532 = vpack.c.b16 %v1228, %v1224
        %v1533 = vpack.c.b16 %v1229, %v1225
        %v1534 = vpack.c.b16 %v1230, %v1226
        %v1535 = vpack.c.b16 %v1235, %v1231
        %v1536 = vpack.c.b16 %v1236, %v1232
        %v1537 = vpack.c.b16 %v1237, %v1233
        %v1538 = vpack.c.b16 %v1238, %v1234
        %v1539 = vpack.c.b16 %v1243, %v1239
        %v1540 = vpack.c.b16 %v1244, %v1240
        %v1541 = vpack.c.b16 %v1245, %v1241
        %v1542 = vpack.c.b16 %v1246, %v1242
        %v1543 = vpack.c.b16 %v1251, %v1247
        %v1544 = vpack.c.b16 %v1252, %v1248
        %v1545 = vpack.c.b16 %v1253, %v1249
        %v1546 = vpack.c.b16 %v1254, %v1250
        %v1547 = vpack.c.b16 %v1259, %v1255
        %v1548 = vpack.c.b16 %v1260, %v1256
        %v1549 = vpack.c.b16 %v1261, %v1257
        %v1550 = vpack.c.b16 %v1262, %v1258
        %v1551 = vpack.c.b16 %v1267, %v1263
        %v1552 = vpack.c.b16 %v1268, %v1264
        %v1553 = vpack.c.b16 %v1269, %v1265
        %v1554 = vpack.c.b16 %v1270, %v1266
        %v1555 = vpack.c.b16 %v1275, %v1271
        %v1556 = vpack.c.b16 %v1276, %v1272
        %v1557 = vpack.c.b16 %v1277, %v1273
        %v1558 = vpack.c.b16 %v1278, %v1274
        %v1559 = vpack.c.b16 %v1283, %v1279
        %v1560 = vpack.c.b16 %v1284, %v1280
        %v1561 = vpack.c.b16 %v1285, %v1281
        %v1562 = vpack.c.b16 %v1286, %v1282
        %v1563 = vpack.c.b16 %v1291, %v1287
        %v1564 = vpack.c.b16 %v1292, %v1288
        %v1565 = vpack.c.b16 %v1293, %v1289
        %v1566 = vpack.c.b16 %v1294, %v1290
        %v1567 = vpack.c.b16 %v1299, %v1295
        %v1568 = vpack.c.b16 %v1300, %v1296
        %v1569 = vpack.c.b16 %v1301, %v1297
        %v1570 = vpack.c.b16 %v1302, %v1298
        %v1571 = vpack.c.b16 %v1307, %v1303
        %v1572 = vpack.c.b16 %v1308, %v1304
        %v1573 = vpack.c.b16 %v1309, %v1305
        %v1574 = vpack.c.b16 %v1310, %v1306
        %v1575 = vpack.c.b16 %v1315, %v1311
        %v1576 = vpack.c.b16 %v1316, %v1312
        %v1577 = vpack.c.b16 %v1317, %v1313
        %v1578 = vpack.c.b16 %v1318, %v1314
        %v1579 = vpack.c.b16 %v1323, %v1319
        %v1580 = vpack.c.b16 %v1324, %v1320
        %v1581 = vpack.c.b16 %v1325, %v1321
        %v1582 = vpack.c.b16 %v1326, %v1322
        %1839 = vmatpush.bf16.msra.mxu0 %v1355
        %1840 = vmatpush.bf16.msra.mxu0 %v1351
        %1841 = vmatpush.bf16.msra.mxu0 %v1347
        %1842 = vmatpush.bf16.msra.mxu0 %v1343
        %1843 = vmatpush.bf16.msra.mxu0 %v1339
        %1844 = vmatpush.bf16.msra.mxu0 %v1335
        %1845 = vmatpush.bf16.msra.mxu0 %v1331
        %1846 = vmatpush.bf16.msra.mxu0 %v1327
        %1847 = vmatmul.bf16.gmra.mxu0 %v295
        %v1848 = vpop.f32.mrf.mxu0
        %v1849 = vadd.f32 0.0, %v1848
        %v1850 = vpop.f32.mrf.mxu0
        %1851 = vdwg.mxu0
        %1852 = vmatpush.bf16.msra.mxu0 %v1387
        %1853 = vmatpush.bf16.msra.mxu0 %v1383
        %1854 = vmatpush.bf16.msra.mxu0 %v1379
        %1855 = vmatpush.bf16.msra.mxu0 %v1375
        %1856 = vmatpush.bf16.msra.mxu0 %v1371
        %1857 = vmatpush.bf16.msra.mxu0 %v1367
        %1858 = vmatpush.bf16.msra.mxu0 %v1363
        %1859 = vmatpush.bf16.msra.mxu0 %v1359
        %1860 = vmatmul.bf16.gmra.mxu0 %v296
        %v1861 = vpop.f32.mrf.mxu0
        %v1862 = vadd.f32 %v1849, %v1861
        %v1863 = vpop.f32.mrf.mxu0
        %1864 = vdwg.mxu0
        %1865 = vmatpush.bf16.msra.mxu0 %v1419
        %1866 = vmatpush.bf16.msra.mxu0 %v1415
        %1867 = vmatpush.bf16.msra.mxu0 %v1411
        %1868 = vmatpush.bf16.msra.mxu0 %v1407
        %1869 = vmatpush.bf16.msra.mxu0 %v1403
        %1870 = vmatpush.bf16.msra.mxu0 %v1399
        %1871 = vmatpush.bf16.msra.mxu0 %v1395
        %1872 = vmatpush.bf16.msra.mxu0 %v1391
        %1873 = vmatmul.bf16.gmra.mxu0 %v297
        %v1874 = vpop.f32.mrf.mxu0
        %v1875 = vadd.f32 %v1862, %v1874
        %v1876 = vpop.f32.mrf.mxu0
        %1877 = vdwg.mxu0
        %1878 = vmatpush.bf16.msra.mxu0 %v1451
        %1879 = vmatpush.bf16.msra.mxu0 %v1447
        %1880 = vmatpush.bf16.msra.mxu0 %v1443
        %1881 = vmatpush.bf16.msra.mxu0 %v1439
        %1882 = vmatpush.bf16.msra.mxu0 %v1435
        %1883 = vmatpush.bf16.msra.mxu0 %v1431
        %1884 = vmatpush.bf16.msra.mxu0 %v1427
        %1885 = vmatpush.bf16.msra.mxu0 %v1423
        %1886 = vmatmul.bf16.gmra.mxu0 %v298
        %v1887 = vpop.f32.mrf.mxu0
        %v1888 = vadd.f32 %v1875, %v1887
        %v1889 = vpop.f32.mrf.mxu0
        %1890 = vdwg.mxu0
        %1891 = vmatpush.bf16.msra.mxu0 %v1483
        %1892 = vmatpush.bf16.msra.mxu0 %v1479
        %1893 = vmatpush.bf16.msra.mxu0 %v1475
        %1894 = vmatpush.bf16.msra.mxu0 %v1471
        %1895 = vmatpush.bf16.msra.mxu0 %v1467
        %1896 = vmatpush.bf16.msra.mxu0 %v1463
        %1897 = vmatpush.bf16.msra.mxu0 %v1459
        %1898 = vmatpush.bf16.msra.mxu0 %v1455
        %1899 = vmatmul.bf16.gmra.mxu0 %v299
        %v1900 = vpop.f32.mrf.mxu0
        %v1901 = vadd.f32 %v1888, %v1900
        %v1902 = vpop.f32.mrf.mxu0
        %1903 = vdwg.mxu0
        %1904 = vmatpush.bf16.msra.mxu0 %v1515
        %1905 = vmatpush.bf16.msra.mxu0 %v1511
        %1906 = vmatpush.bf16.msra.mxu0 %v1507
        %1907 = vmatpush.bf16.msra.mxu0 %v1503
        %1908 = vmatpush.bf16.msra.mxu0 %v1499
        %1909 = vmatpush.bf16.msra.mxu0 %v1495
        %1910 = vmatpush.bf16.msra.mxu0 %v1491
        %1911 = vmatpush.bf16.msra.mxu0 %v1487
        %1912 = vmatmul.bf16.gmra.mxu0 %v300
        %v1913 = vpop.f32.mrf.mxu0
        %v1914 = vadd.f32 %v1901, %v1913
        %v1915 = vpop.f32.mrf.mxu0
        %1916 = vdwg.mxu0
        %1917 = vmatpush.bf16.msra.mxu0 %v1547
        %1918 = vmatpush.bf16.msra.mxu0 %v1543
        %1919 = vmatpush.bf16.msra.mxu0 %v1539
        %1920 = vmatpush.bf16.msra.mxu0 %v1535
        %1921 = vmatpush.bf16.msra.mxu0 %v1531
        %1922 = vmatpush.bf16.msra.mxu0 %v1527
        %1923 = vmatpush.bf16.msra.mxu0 %v1523
        %1924 = vmatpush.bf16.msra.mxu0 %v1519
        %1925 = vmatmul.bf16.gmra.mxu0 %v301
        %v1926 = vpop.f32.mrf.mxu0
        %v1927 = vadd.f32 %v1914, %v1926
        %v1928 = vpop.f32.mrf.mxu0
        %1929 = vdwg.mxu0
        %1930 = vmatpush.bf16.msra.mxu0 %v1579
        %1931 = vmatpush.bf16.msra.mxu0 %v1575
        %1932 = vmatpush.bf16.msra.mxu0 %v1571
        %1933 = vmatpush.bf16.msra.mxu0 %v1567
        %1934 = vmatpush.bf16.msra.mxu0 %v1563
        %1935 = vmatpush.bf16.msra.mxu0 %v1559
        %1936 = vmatpush.bf16.msra.mxu0 %v1555
        %1937 = vmatpush.bf16.msra.mxu0 %v1551
        %1938 = vmatmul.bf16.gmra.mxu0 %v302
        %v1939 = vpop.f32.mrf.mxu0
        %v1940 = vadd.f32 %v1927, %v1939
        %v1941 = vpop.f32.mrf.mxu0
        %1942 = vdwg.mxu0
        %1943 = vmatpush.bf16.msra.mxu0 %v1356
        %1944 = vmatpush.bf16.msra.mxu0 %v1352
        %1945 = vmatpush.bf16.msra.mxu0 %v1348
        %1946 = vmatpush.bf16.msra.mxu0 %v1344
        %1947 = vmatpush.bf16.msra.mxu0 %v1340
        %1948 = vmatpush.bf16.msra.mxu0 %v1336
        %1949 = vmatpush.bf16.msra.mxu0 %v1332
        %1950 = vmatpush.bf16.msra.mxu0 %v1328
        %1951 = vmatmul.bf16.gmra.mxu0 %v295
        %v1952 = vpop.f32.mrf.mxu0
        %v1953 = vadd.f32 0.0, %v1952
        %v1954 = vpop.f32.mrf.mxu0
        %1955 = vdwg.mxu0
        %1956 = vmatpush.bf16.msra.mxu0 %v1388
        %1957 = vmatpush.bf16.msra.mxu0 %v1384
        %1958 = vmatpush.bf16.msra.mxu0 %v1380
        %1959 = vmatpush.bf16.msra.mxu0 %v1376
        %1960 = vmatpush.bf16.msra.mxu0 %v1372
        %1961 = vmatpush.bf16.msra.mxu0 %v1368
        %1962 = vmatpush.bf16.msra.mxu0 %v1364
        %1963 = vmatpush.bf16.msra.mxu0 %v1360
        %1964 = vmatmul.bf16.gmra.mxu0 %v296
        %v1965 = vpop.f32.mrf.mxu0
        %v1966 = vadd.f32 %v1953, %v1965
        %v1967 = vpop.f32.mrf.mxu0
        %1968 = vdwg.mxu0
        %1969 = vmatpush.bf16.msra.mxu0 %v1420
        %1970 = vmatpush.bf16.msra.mxu0 %v1416
        %1971 = vmatpush.bf16.msra.mxu0 %v1412
        %1972 = vmatpush.bf16.msra.mxu0 %v1408
        %1973 = vmatpush.bf16.msra.mxu0 %v1404
        %1974 = vmatpush.bf16.msra.mxu0 %v1400
        %1975 = vmatpush.bf16.msra.mxu0 %v1396
        %1976 = vmatpush.bf16.msra.mxu0 %v1392
        %1977 = vmatmul.bf16.gmra.mxu0 %v297
        %v1978 = vpop.f32.mrf.mxu0
        %v1979 = vadd.f32 %v1966, %v1978
        %v1980 = vpop.f32.mrf.mxu0
        %1981 = vdwg.mxu0
        %1982 = vmatpush.bf16.msra.mxu0 %v1452
        %1983 = vmatpush.bf16.msra.mxu0 %v1448
        %1984 = vmatpush.bf16.msra.mxu0 %v1444
        %1985 = vmatpush.bf16.msra.mxu0 %v1440
        %1986 = vmatpush.bf16.msra.mxu0 %v1436
        %1987 = vmatpush.bf16.msra.mxu0 %v1432
        %1988 = vmatpush.bf16.msra.mxu0 %v1428
        %1989 = vmatpush.bf16.msra.mxu0 %v1424
        %1990 = vmatmul.bf16.gmra.mxu0 %v298
        %v1991 = vpop.f32.mrf.mxu0
        %v1992 = vadd.f32 %v1979, %v1991
        %v1993 = vpop.f32.mrf.mxu0
        %1994 = vdwg.mxu0
        %1995 = vmatpush.bf16.msra.mxu0 %v1484
        %1996 = vmatpush.bf16.msra.mxu0 %v1480
        %1997 = vmatpush.bf16.msra.mxu0 %v1476
        %1998 = vmatpush.bf16.msra.mxu0 %v1472
        %1999 = vmatpush.bf16.msra.mxu0 %v1468
        %2000 = vmatpush.bf16.msra.mxu0 %v1464
        %2001 = vmatpush.bf16.msra.mxu0 %v1460
        %2002 = vmatpush.bf16.msra.mxu0 %v1456
        %2003 = vmatmul.bf16.gmra.mxu0 %v299
        %v2004 = vpop.f32.mrf.mxu0
        %v2005 = vadd.f32 %v1992, %v2004
        %v2006 = vpop.f32.mrf.mxu0
        %2007 = vdwg.mxu0
        %2008 = vmatpush.bf16.msra.mxu0 %v1516
        %2009 = vmatpush.bf16.msra.mxu0 %v1512
        %2010 = vmatpush.bf16.msra.mxu0 %v1508
        %2011 = vmatpush.bf16.msra.mxu0 %v1504
        %2012 = vmatpush.bf16.msra.mxu0 %v1500
        %2013 = vmatpush.bf16.msra.mxu0 %v1496
        %2014 = vmatpush.bf16.msra.mxu0 %v1492
        %2015 = vmatpush.bf16.msra.mxu0 %v1488
        %2016 = vmatmul.bf16.gmra.mxu0 %v300
        %v2017 = vpop.f32.mrf.mxu0
        %v2018 = vadd.f32 %v2005, %v2017
        %v2019 = vpop.f32.mrf.mxu0
        %2020 = vdwg.mxu0
        %2021 = vmatpush.bf16.msra.mxu0 %v1548
        %2022 = vmatpush.bf16.msra.mxu0 %v1544
        %2023 = vmatpush.bf16.msra.mxu0 %v1540
        %2024 = vmatpush.bf16.msra.mxu0 %v1536
        %2025 = vmatpush.bf16.msra.mxu0 %v1532
        %2026 = vmatpush.bf16.msra.mxu0 %v1528
        %2027 = vmatpush.bf16.msra.mxu0 %v1524
        %2028 = vmatpush.bf16.msra.mxu0 %v1520
        %2029 = vmatmul.bf16.gmra.mxu0 %v301
        %v2030 = vpop.f32.mrf.mxu0
        %v2031 = vadd.f32 %v2018, %v2030
        %v2032 = vpop.f32.mrf.mxu0
        %2033 = vdwg.mxu0
        %2034 = vmatpush.bf16.msra.mxu0 %v1580
        %2035 = vmatpush.bf16.msra.mxu0 %v1576
        %2036 = vmatpush.bf16.msra.mxu0 %v1572
        %2037 = vmatpush.bf16.msra.mxu0 %v1568
        %2038 = vmatpush.bf16.msra.mxu0 %v1564
        %2039 = vmatpush.bf16.msra.mxu0 %v1560
        %2040 = vmatpush.bf16.msra.mxu0 %v1556
        %2041 = vmatpush.bf16.msra.mxu0 %v1552
        %2042 = vmatmul.bf16.gmra.mxu0 %v302
        %v2043 = vpop.f32.mrf.mxu0
        %v2044 = vadd.f32 %v2031, %v2043
        %v2045 = vpop.f32.mrf.mxu0
        %2046 = vdwg.mxu0
        %2047 = vmatpush.bf16.msra.mxu0 %v1357
        %2048 = vmatpush.bf16.msra.mxu0 %v1353
        %2049 = vmatpush.bf16.msra.mxu0 %v1349
        %2050 = vmatpush.bf16.msra.mxu0 %v1345
        %2051 = vmatpush.bf16.msra.mxu0 %v1341
        %2052 = vmatpush.bf16.msra.mxu0 %v1337
        %2053 = vmatpush.bf16.msra.mxu0 %v1333
        %2054 = vmatpush.bf16.msra.mxu0 %v1329
        %2055 = vmatmul.bf16.gmra.mxu0 %v295
        %v2056 = vpop.f32.mrf.mxu0
        %v2057 = vadd.f32 0.0, %v2056
        %v2058 = vpop.f32.mrf.mxu0
        %2059 = vdwg.mxu0
        %2060 = vmatpush.bf16.msra.mxu0 %v1389
        %2061 = vmatpush.bf16.msra.mxu0 %v1385
        %2062 = vmatpush.bf16.msra.mxu0 %v1381
        %2063 = vmatpush.bf16.msra.mxu0 %v1377
        %2064 = vmatpush.bf16.msra.mxu0 %v1373
        %2065 = vmatpush.bf16.msra.mxu0 %v1369
        %2066 = vmatpush.bf16.msra.mxu0 %v1365
        %2067 = vmatpush.bf16.msra.mxu0 %v1361
        %2068 = vmatmul.bf16.gmra.mxu0 %v296
        %v2069 = vpop.f32.mrf.mxu0
        %v2070 = vadd.f32 %v2057, %v2069
        %v2071 = vpop.f32.mrf.mxu0
        %2072 = vdwg.mxu0
        %2073 = vmatpush.bf16.msra.mxu0 %v1421
        %2074 = vmatpush.bf16.msra.mxu0 %v1417
        %2075 = vmatpush.bf16.msra.mxu0 %v1413
        %2076 = vmatpush.bf16.msra.mxu0 %v1409
        %2077 = vmatpush.bf16.msra.mxu0 %v1405
        %2078 = vmatpush.bf16.msra.mxu0 %v1401
        %2079 = vmatpush.bf16.msra.mxu0 %v1397
        %2080 = vmatpush.bf16.msra.mxu0 %v1393
        %2081 = vmatmul.bf16.gmra.mxu0 %v297
        %v2082 = vpop.f32.mrf.mxu0
        %v2083 = vadd.f32 %v2070, %v2082
        %v2084 = vpop.f32.mrf.mxu0
        %2085 = vdwg.mxu0
        %2086 = vmatpush.bf16.msra.mxu0 %v1453
        %2087 = vmatpush.bf16.msra.mxu0 %v1449
        %2088 = vmatpush.bf16.msra.mxu0 %v1445
        %2089 = vmatpush.bf16.msra.mxu0 %v1441
        %2090 = vmatpush.bf16.msra.mxu0 %v1437
        %2091 = vmatpush.bf16.msra.mxu0 %v1433
        %2092 = vmatpush.bf16.msra.mxu0 %v1429
        %2093 = vmatpush.bf16.msra.mxu0 %v1425
        %2094 = vmatmul.bf16.gmra.mxu0 %v298
        %v2095 = vpop.f32.mrf.mxu0
        %v2096 = vadd.f32 %v2083, %v2095
        %v2097 = vpop.f32.mrf.mxu0
        %2098 = vdwg.mxu0
        %2099 = vmatpush.bf16.msra.mxu0 %v1485
        %2100 = vmatpush.bf16.msra.mxu0 %v1481
        %2101 = vmatpush.bf16.msra.mxu0 %v1477
        %2102 = vmatpush.bf16.msra.mxu0 %v1473
        %2103 = vmatpush.bf16.msra.mxu0 %v1469
        %2104 = vmatpush.bf16.msra.mxu0 %v1465
        %2105 = vmatpush.bf16.msra.mxu0 %v1461
        %2106 = vmatpush.bf16.msra.mxu0 %v1457
        %2107 = vmatmul.bf16.gmra.mxu0 %v299
        %v2108 = vpop.f32.mrf.mxu0
        %v2109 = vadd.f32 %v2096, %v2108
        %v2110 = vpop.f32.mrf.mxu0
        %2111 = vdwg.mxu0
        %2112 = vmatpush.bf16.msra.mxu0 %v1517
        %2113 = vmatpush.bf16.msra.mxu0 %v1513
        %2114 = vmatpush.bf16.msra.mxu0 %v1509
        %2115 = vmatpush.bf16.msra.mxu0 %v1505
        %2116 = vmatpush.bf16.msra.mxu0 %v1501
        %2117 = vmatpush.bf16.msra.mxu0 %v1497
        %2118 = vmatpush.bf16.msra.mxu0 %v1493
        %2119 = vmatpush.bf16.msra.mxu0 %v1489
        %2120 = vmatmul.bf16.gmra.mxu0 %v300
        %v2121 = vpop.f32.mrf.mxu0
        %v2122 = vadd.f32 %v2109, %v2121
        %v2123 = vpop.f32.mrf.mxu0
        %2124 = vdwg.mxu0
        %2125 = vmatpush.bf16.msra.mxu0 %v1549
        %2126 = vmatpush.bf16.msra.mxu0 %v1545
        %2127 = vmatpush.bf16.msra.mxu0 %v1541
        %2128 = vmatpush.bf16.msra.mxu0 %v1537
        %2129 = vmatpush.bf16.msra.mxu0 %v1533
        %2130 = vmatpush.bf16.msra.mxu0 %v1529
        %2131 = vmatpush.bf16.msra.mxu0 %v1525
        %2132 = vmatpush.bf16.msra.mxu0 %v1521
        %2133 = vmatmul.bf16.gmra.mxu0 %v301
        %v2134 = vpop.f32.mrf.mxu0
        %v2135 = vadd.f32 %v2122, %v2134
        %v2136 = vpop.f32.mrf.mxu0
        %2137 = vdwg.mxu0
        %2138 = vmatpush.bf16.msra.mxu0 %v1581
        %2139 = vmatpush.bf16.msra.mxu0 %v1577
        %2140 = vmatpush.bf16.msra.mxu0 %v1573
        %2141 = vmatpush.bf16.msra.mxu0 %v1569
        %2142 = vmatpush.bf16.msra.mxu0 %v1565
        %2143 = vmatpush.bf16.msra.mxu0 %v1561
        %2144 = vmatpush.bf16.msra.mxu0 %v1557
        %2145 = vmatpush.bf16.msra.mxu0 %v1553
        %2146 = vmatmul.bf16.gmra.mxu0 %v302
        %v2147 = vpop.f32.mrf.mxu0
        %v2148 = vadd.f32 %v2135, %v2147
        %v2149 = vpop.f32.mrf.mxu0
        %2150 = vdwg.mxu0
        %2151 = vmatpush.bf16.msra.mxu0 %v1358
        %2152 = vmatpush.bf16.msra.mxu0 %v1354
        %2153 = vmatpush.bf16.msra.mxu0 %v1350
        %2154 = vmatpush.bf16.msra.mxu0 %v1346
        %2155 = vmatpush.bf16.msra.mxu0 %v1342
        %2156 = vmatpush.bf16.msra.mxu0 %v1338
        %2157 = vmatpush.bf16.msra.mxu0 %v1334
        %2158 = vmatpush.bf16.msra.mxu0 %v1330
        %2159 = vmatmul.bf16.gmra.mxu0 %v295
        %v2160 = vpop.f32.mrf.mxu0
        %v2161 = vadd.f32 0.0, %v2160
        %v2162 = vpop.f32.mrf.mxu0
        %2163 = vdwg.mxu0
        %2164 = vmatpush.bf16.msra.mxu0 %v1390
        %2165 = vmatpush.bf16.msra.mxu0 %v1386
        %2166 = vmatpush.bf16.msra.mxu0 %v1382
        %2167 = vmatpush.bf16.msra.mxu0 %v1378
        %2168 = vmatpush.bf16.msra.mxu0 %v1374
        %2169 = vmatpush.bf16.msra.mxu0 %v1370
        %2170 = vmatpush.bf16.msra.mxu0 %v1366
        %2171 = vmatpush.bf16.msra.mxu0 %v1362
        %2172 = vmatmul.bf16.gmra.mxu0 %v296
        %v2173 = vpop.f32.mrf.mxu0
        %v2174 = vadd.f32 %v2161, %v2173
        %v2175 = vpop.f32.mrf.mxu0
        %2176 = vdwg.mxu0
        %2177 = vmatpush.bf16.msra.mxu0 %v1422
        %2178 = vmatpush.bf16.msra.mxu0 %v1418
        %2179 = vmatpush.bf16.msra.mxu0 %v1414
        %2180 = vmatpush.bf16.msra.mxu0 %v1410
        %2181 = vmatpush.bf16.msra.mxu0 %v1406
        %2182 = vmatpush.bf16.msra.mxu0 %v1402
        %2183 = vmatpush.bf16.msra.mxu0 %v1398
        %2184 = vmatpush.bf16.msra.mxu0 %v1394
        %2185 = vmatmul.bf16.gmra.mxu0 %v297
        %v2186 = vpop.f32.mrf.mxu0
        %v2187 = vadd.f32 %v2174, %v2186
        %v2188 = vpop.f32.mrf.mxu0
        %2189 = vdwg.mxu0
        %2190 = vmatpush.bf16.msra.mxu0 %v1454
        %2191 = vmatpush.bf16.msra.mxu0 %v1450
        %2192 = vmatpush.bf16.msra.mxu0 %v1446
        %2193 = vmatpush.bf16.msra.mxu0 %v1442
        %2194 = vmatpush.bf16.msra.mxu0 %v1438
        %2195 = vmatpush.bf16.msra.mxu0 %v1434
        %2196 = vmatpush.bf16.msra.mxu0 %v1430
        %2197 = vmatpush.bf16.msra.mxu0 %v1426
        %2198 = vmatmul.bf16.gmra.mxu0 %v298
        %v2199 = vpop.f32.mrf.mxu0
        %v2200 = vadd.f32 %v2187, %v2199
        %v2201 = vpop.f32.mrf.mxu0
        %2202 = vdwg.mxu0
        %2203 = vmatpush.bf16.msra.mxu0 %v1486
        %2204 = vmatpush.bf16.msra.mxu0 %v1482
        %2205 = vmatpush.bf16.msra.mxu0 %v1478
        %2206 = vmatpush.bf16.msra.mxu0 %v1474
        %2207 = vmatpush.bf16.msra.mxu0 %v1470
        %2208 = vmatpush.bf16.msra.mxu0 %v1466
        %2209 = vmatpush.bf16.msra.mxu0 %v1462
        %2210 = vmatpush.bf16.msra.mxu0 %v1458
        %2211 = vmatmul.bf16.gmra.mxu0 %v299
        %v2212 = vpop.f32.mrf.mxu0
        %v2213 = vadd.f32 %v2200, %v2212
        %v2214 = vpop.f32.mrf.mxu0
        %2215 = vdwg.mxu0
        %2216 = vmatpush.bf16.msra.mxu0 %v1518
        %2217 = vmatpush.bf16.msra.mxu0 %v1514
        %2218 = vmatpush.bf16.msra.mxu0 %v1510
        %2219 = vmatpush.bf16.msra.mxu0 %v1506
        %2220 = vmatpush.bf16.msra.mxu0 %v1502
        %2221 = vmatpush.bf16.msra.mxu0 %v1498
        %2222 = vmatpush.bf16.msra.mxu0 %v1494
        %2223 = vmatpush.bf16.msra.mxu0 %v1490
        %2224 = vmatmul.bf16.gmra.mxu0 %v300
        %v2225 = vpop.f32.mrf.mxu0
        %v2226 = vadd.f32 %v2213, %v2225
        %v2227 = vpop.f32.mrf.mxu0
        %2228 = vdwg.mxu0
        %2229 = vmatpush.bf16.msra.mxu0 %v1550
        %2230 = vmatpush.bf16.msra.mxu0 %v1546
        %2231 = vmatpush.bf16.msra.mxu0 %v1542
        %2232 = vmatpush.bf16.msra.mxu0 %v1538
        %2233 = vmatpush.bf16.msra.mxu0 %v1534
        %2234 = vmatpush.bf16.msra.mxu0 %v1530
        %2235 = vmatpush.bf16.msra.mxu0 %v1526
        %2236 = vmatpush.bf16.msra.mxu0 %v1522
        %2237 = vmatmul.bf16.gmra.mxu0 %v301
        %v2238 = vpop.f32.mrf.mxu0
        %v2239 = vadd.f32 %v2226, %v2238
        %v2240 = vpop.f32.mrf.mxu0
        %2241 = vdwg.mxu0
        %2242 = vmatpush.bf16.msra.mxu0 %v1582
        %2243 = vmatpush.bf16.msra.mxu0 %v1578
        %2244 = vmatpush.bf16.msra.mxu0 %v1574
        %2245 = vmatpush.bf16.msra.mxu0 %v1570
        %2246 = vmatpush.bf16.msra.mxu0 %v1566
        %2247 = vmatpush.bf16.msra.mxu0 %v1562
        %2248 = vmatpush.bf16.msra.mxu0 %v1558
        %2249 = vmatpush.bf16.msra.mxu0 %v1554
        %2250 = vmatmul.bf16.gmra.mxu0 %v302
        %v2251 = vpop.f32.mrf.mxu0
        %v2252 = vadd.f32 %v2239, %v2251
        %v2253 = vpop.f32.mrf.mxu0
        %2254 = vdwg.mxu0
        %p2255 = scmp.eq.s32.totalorder %s26, 0
        // Predicated region
        $region45: #{tpu_custom_call.1} parent=31 // pred_check
          %p2256 = pneg %p2255
        $region46: #{tpu_custom_call.1} parent=31 // pred_check_branch
          %2258 = sbr.rel (%p2256) target = $region48
        $region47: #{tpu_custom_call.1} parent=31 // pred_region
          %2259 = vst [vmem:[#allocation2] sm:$0xff] %v1940
          %2260 = vst [vmem:[#allocation2 + $0x8] sm:$0xff] %v2044
          %2261 = vst [vmem:[#allocation2 + $0x10] sm:$0xff] %v2148
          %2262 = vst [vmem:[#allocation2 + $0x18] sm:$0xff] %v2252
        $region48: #{tpu_custom_call.1} parent=31 // pred_fallthru
          _
        %p2263 = scmp.ne.s32.totalorder %s26, 0
        // Predicated region
        $region49: #{tpu_custom_call.1} parent=31 // pred_check
          %p2264 = pneg %p2263
        $region50: #{tpu_custom_call.1} parent=31 // pred_check_branch
          %2266 = sbr.rel (%p2264) target = $region52
        $region51: #{tpu_custom_call.1} parent=31 // pred_region
          %v2267 = vld [vmem:[#allocation2] sm:$0xff]
          %v2268 = vld [vmem:[#allocation2 + $0x8] sm:$0xff]
          %v2269 = vld [vmem:[#allocation2 + $0x10] sm:$0xff]
          %v2270 = vld [vmem:[#allocation2 + $0x18] sm:$0xff]
          %v2271 = vadd.f32 %v2267, %v1940
          %v2272 = vadd.f32 %v2268, %v2044
          %v2273 = vadd.f32 %v2269, %v2148
          %v2274 = vadd.f32 %v2270, %v2252
          %2275 = vst [vmem:[#allocation2] sm:$0xff] %v2271
          %2276 = vst [vmem:[#allocation2 + $0x8] sm:$0xff] %v2272
          %2277 = vst [vmem:[#allocation2 + $0x10] sm:$0xff] %v2273
          %2278 = vst [vmem:[#allocation2 + $0x18] sm:$0xff] %v2274
        $region52: #{tpu_custom_call.1} parent=31 // pred_fallthru
          _
        // Predicated region
        $region53: #{tpu_custom_call.1} parent=31 // pred_check
          %p2279 = pneg %p2255
        $region54: #{tpu_custom_call.1} parent=31 // pred_check_branch
          %2281 = sbr.rel (%p2279) target = $region56
        $region55: #{tpu_custom_call.1} parent=31 // pred_region
          %v2282 = vld [vmem:[#allocation2] sm:$0xff]
          %v2283 = vld [vmem:[#allocation2 + $0x8] sm:$0xff]
          %v2284 = vld [vmem:[#allocation2 + $0x10] sm:$0xff]
          %v2285 = vld [vmem:[#allocation2 + $0x18] sm:$0xff]
          %2286 = vst [vmem:[%s251] sm:$0xff] %v2282
          %2287 = vst [vmem:[%s251 + $0x8] sm:$0xff] %v2283
          %2288 = vst [vmem:[%s251 + $0x10] sm:$0xff] %v2284
          %2289 = vst [vmem:[%s251 + $0x18] sm:$0xff] %v2285
        $region56: #{tpu_custom_call.1} parent=31 // pred_fallthru
          _
        %s2290 = sand.u32 %s123, 1
        %s2291 = scalar_lea.sflag [#allocation5], %s2290
        %s2292 = sand.u32 %s123, 1
        %s2293 = smul.addr %s2292, 32
        %s2294 = scalar_lea.vmem [#allocation9], %s2293
        // Predicated region
        $region57: #{tpu_custom_call.1} parent=31 // pred_check
          %p2295 = pneg %p133
        $region58: #{tpu_custom_call.1} parent=31 // pred_check_branch
          %2297 = sbr.rel (%p2295) target = $region60
        $region59: #{tpu_custom_call.1} parent=31 // pred_region
          %s2298 = smul.u32 4, %s25
          %2300 = vsyncadd %s2291, 0
          %s2301 = smul.addr %s24, 8
          %s2302 = sadd.s32 %s2298, %s2301
          %s2303 = smul.addr %s2302, 8
          %s2304 = scalar_lea.hbm %s3, %s2303
          %s2306 = sshll.u32 %s2294, 4
          %s2307 = int_to_ptr.vmem [resolvable:$true] %s2306
          %s2308 = sshll.u32 %s2304, 4
          %s2309 = int_to_ptr.hbm [resolvable:$true] %s2308
          %2311 = dma.vmem_to_hbm [thread:$0]  %s2307, 512, %s2309, %s2291
        $region60: #{tpu_custom_call.1} parent=31 // pred_fallthru
          _
      $region32: #{tpu_custom_call.1} parent=5 // pred_fallthru
        _
      %p2312 = scmp.le.s32.totalorder 2, %s14
      // Predicated region
      $region61: #{tpu_custom_call.1} parent=5 // pred_check
        %p2313 = pneg %p2312
      $region62: #{tpu_custom_call.1} parent=5 // pred_check_branch
        %2315 = sbr.rel (%p2313) target = $region64
      $region63: #{tpu_custom_call.1} parent=5 // pred_region
        %s2316 = ssub.s32 %s14, 2
        // Predicated region
        $region65: #{tpu_custom_call.1} parent=63 // pred_check
          %p2317 = pneg %p139
        $region66: #{tpu_custom_call.1} parent=63 // pred_check_branch
          %2319 = sbr.rel (%p2317) target = $region68
        $region67: #{tpu_custom_call.1} parent=63 // pred_region
          %s2320 = sand.u32 %s124, 1
          %s2321 = scalar_lea.sflag [#allocation5], %s2320
          %s2322 = sand.u32 %s124, 1
          %s2323 = smul.addr %s2322, 32
          %s2324 = scalar_lea.vmem [#allocation9], %s2323
          %2326 = dma.done %s2321, 512
        $region68: #{tpu_custom_call.1} parent=63 // pred_fallthru
          _
      $region64: #{tpu_custom_call.1} parent=5 // pred_fallthru
        _
    $region6: #{tpu_custom_call.1} parent=1 // loop_footer
      %s18 = sadd.s32 1, %s14
    $region7: #{tpu_custom_call.1} parent=1 // loop_footer_branch
      %13 = sbr.rel target = $region3
    $region8: #{tpu_custom_call.1} parent=1 // loop_exit
      _
    %2327 = vsyncpa [#allocation4], 1
    %s2328 = scalar_lea.sflag [#allocation4], 1
    %2329 = vsyncpa %s2328, 1
    %2330 = vsyncpa [#allocation7], 1
    %2331 = vsyncpa [#allocation5], 1
    %s2332 = scalar_lea.sflag [#allocation5], 1
    %2333 = vsyncpa %s2332, 1

</llo_original>
